<compile_context>
chip_gen: v6e
topology: v6e:2x2x1
jax: 0.10.0
libtpu: 0.0.40
codegen_flags: <defaults>
</compile_context>

<pallas_src>
import jax
import jax.numpy as jnp
import numpy as np
from jax.experimental import pallas as pl
from jax.experimental.pallas import tpu as pltpu


def _silu(x):
    return x * jax.nn.sigmoid(x)


# ----------------------------- kernel ---------------------------------------

def _make_psa_kernel(bt, n, c, num_heads, key_dim, head_dim):
    f32 = jnp.float32
    bf16 = jnp.bfloat16
    rows = bt * n
    nh_kd = num_heads * key_dim

    def mm(x, w_ref, b_ref=None):
        # bf16 MXU feed, f32 accumulation; bias added in f32.
        y = jnp.dot(x.astype(bf16), w_ref[...], preferred_element_type=f32)
        if b_ref is not None:
            y = y + b_ref[...]
        return y

    def kernel(x_ref,
               w_cv1, b_cv1, w_qkv, b_qkv, w_pe, b_pe, w_proj, b_proj,
               w_ffn1, b_ffn1, w_ffn2, b_ffn2, w_cv2, b_cv2,
               o_ref, attn_acc):
        # Flatten (bt, n, C1) -> (rows, C1): every 1x1 conv fills rows MXU rows.
        x = x_ref[...].reshape(rows, x_ref.shape[-1])             # bf16 block

        # cv1 (+ folded BN) + SiLU as ONE fused matmul producing 2c lanes;
        # a/b are slices of the fused output instead of two half-width matmuls.
        y = _silu(mm(x, w_cv1, b_cv1))                            # (rows, 2c)
        a_part = y[:, :c]
        b_part = y[:, c:]

        # ---- Attention ------------------------------------------------------
        # Fused QKV matmul; columns host-side reordered to [Q | K | V] (head-
        # major) with the attention scale folded into the Q columns.
        qkv = mm(b_part, w_qkv, b_qkv)                            # (rows, h)
        q_all = qkv[:, :nh_kd]
        k_all = qkv[:, nh_kd:2 * nh_kd]
        v_all = qkv[:, 2 * nh_kd:]                                # (rows, c)

        # Per (batch, head) attention; each head's output is stored into a VMEM
        # scratch accumulator so its score/prob tiles die before the next head.
        # TODO(synk): for production-scale n (>= ~1K positions) replace the full
        # (n, n) score tile with a flash-style KV-block loop (m/l running stats).
        for bi in range(bt):                                      # static unroll
            r0, r1 = bi * n, (bi + 1) * n
            for h in range(num_heads):                            # static unroll
                q_h = q_all[r0:r1, h * key_dim:(h + 1) * key_dim]
                k_h = k_all[r0:r1, h * key_dim:(h + 1) * key_dim]
                v_h = v_all[r0:r1, h * head_dim:(h + 1) * head_dim]
                # s[i, j] = sum_d q[d, i] * k[d, j]  (torch: q^T @ k; scale folded)
                s = jax.lax.dot_general(
                    q_h.astype(bf16), k_h.astype(bf16),
                    (((1,), (1,)), ((), ())),
                    preferred_element_type=f32)
                s = s - jnp.max(s, axis=-1, keepdims=True)
                p = jnp.exp(s)
                # divide -> EUP approximate reciprocal (frees VALU slots)
                p = p * pl.reciprocal(jnp.sum(p, axis=-1, keepdims=True),
                                      approx=True)
                # out[i, d] = sum_j p[i, j] * v[j, d]  (torch: v @ attn^T)
                attn_acc[r0:r1, h * head_dim:(h + 1) * head_dim] = jnp.dot(
                    p.astype(bf16), v_h.astype(bf16), preferred_element_type=f32)
        attn_out = attn_acc[...]

        # Positional encoding: depthwise conv1d, k=3, pad=1 (folded BN) on V.
        # The +/-1 position shift is an XLU sublane rotation (pltpu.roll); a
        # (rows, 1) iota mask zeroes the per-batch-element boundaries (zero pad).
        pos = jax.lax.broadcasted_iota(jnp.int32, (rows, 1), 0) % n
        v_prev = jnp.where(pos == 0, 0.0, pltpu.roll(v_all, 1, axis=0))
        v_next = jnp.where(pos == n - 1, 0.0, pltpu.roll(v_all, rows - 1, axis=0))
        pe = v_prev * w_pe[0] + v_all * w_pe[1] + v_next * w_pe[2] + b_pe[...]

        att = mm(attn_out + pe, w_proj, b_proj)                   # (rows, c)
        b_part = b_part + att                                     # residual 1

        # ---- FFN --------------------------------------------------------------
        f = _silu(mm(b_part, w_ffn1, b_ffn1))
        f = mm(f, w_ffn2, b_ffn2)
        b_part = b_part + f                                       # residual 2

        # ---- cv2: one lane shift (concat) + one full-width (2c contraction) matmul
        out = _silu(mm(jnp.concatenate([a_part, b_part], axis=-1), w_cv2, b_cv2))
        o_ref[...] = out.reshape(o_ref.shape).astype(o_ref.dtype)

    return kernel


# ------------------------------ wrapper --------------------------------------

def _vmem_limit_bytes():
    """Per-generation scoped-VMEM limit (explicit: v5e default is only 16 MiB,
    v7x has only 64 MiB physical)."""
    try:
        info = pltpu.get_tpu_info()
        cap = int(getattr(info, "vmem_capacity_bytes", 0)) or (64 << 20)
    except Exception:                       # no TPU info available: be conservative
        cap = 64 << 20
    return min(cap * 7 // 8, 112 << 20)


def _pick_batch_tile(b, n, c1, c, h, num_heads, weight_bytes, vmem_budget):
    """Largest divisor of b whose per-step VMEM estimate fits the budget.
    Stop growing once rows = bt*n >= 256 (fills the 256-wide v6e/v7x MXU) while
    >= 2 grid steps remain (work for both v7x TensorCores).  On 1-TC chips extra
    grid steps are pure overhead, so the tile is never shrunk to create them."""
    def est(bt):
        rows = bt * n
        io = 2 * bt * n * c1 * (2 + 4)              # dbl-buffered bf16 in + f32 out
        inter = rows * (12 * c + h + c1) * 4        # rough f32 intermediates
        scores = 2 * bt * num_heads * n * n * 4     # score + exp tiles
        return io + inter + scores + weight_bytes
    best = 1
    for bt in range(1, b + 1):
        if b % bt:
            continue
        if est(bt) > vmem_budget:
            break
        best = bt
        if bt * n >= 256 and (b // bt) >= 2:
            break
    return best


def _prepare_kernel_weights(p, c, num_heads, key_dim, head_dim, scale):
    """Reorder the fused qkv weight columns to [Q | K | V] (head-major), fold the
    attention scale into the Q columns, and pre-cast matmul weights to bf16
    (biases and the depthwise pe weights stay f32)."""
    bf16 = jnp.bfloat16
    per = 2 * key_dim + head_dim
    q_cols = np.concatenate([np.arange(h * per, h * per + key_dim)
                             for h in range(num_heads)])
    k_cols = np.concatenate([np.arange(h * per + key_dim, h * per + 2 * key_dim)
                             for h in range(num_heads)])
    v_cols = np.concatenate([np.arange(h * per + 2 * key_dim, (h + 1) * per)
                             for h in range(num_heads)])
    order = np.concatenate([q_cols, k_cols, v_cols])
    w_qkv = p["w_qkv"][:, order]
    b_qkv = p["b_qkv"][:, order]
    nh_kd = num_heads * key_dim
    qscale = jnp.concatenate([jnp.full((nh_kd,), scale, jnp.float32),
                              jnp.ones((w_qkv.shape[1] - nh_kd,), jnp.float32)])
    w_qkv = w_qkv * qscale[None, :]
    b_qkv = b_qkv * qscale[None, :]
    return {
        "w_cv1": p["w_cv1"].astype(bf16), "b_cv1": p["b_cv1"],
        "w_qkv": w_qkv.astype(bf16), "b_qkv": b_qkv,
        "w_pe": p["w_pe"], "b_pe": p["b_pe"],
        "w_proj": p["w_proj"].astype(bf16), "b_proj": p["b_proj"],
        "w_ffn1": p["w_ffn1"].astype(bf16), "b_ffn1": p["b_ffn1"],
        "w_ffn2": p["w_ffn2"].astype(bf16), "b_ffn2": p["b_ffn2"],
        "w_cv2": p["w_cv2"].astype(bf16), "b_cv2": p["b_cv2"],
    }


def psa1d_forward(x_blc, params, *, c, num_heads, key_dim, head_dim,
                  batch_tile=None):
    """x_blc: (B, L, C1) float32 in (batch, position, channel) layout."""
    B, N, C1 = x_blc.shape
    assert N % 8 == 0, "sequence length must be a multiple of the 8-row sublane tile"
    scale = float(key_dim) ** -0.5
    h = num_heads * (2 * key_dim + head_dim)

    kw = _prepare_kernel_weights(params, c, num_heads, key_dim, head_dim, scale)
    names = ["w_cv1", "b_cv1", "w_qkv", "b_qkv", "w_pe", "b_pe",
             "w_proj", "b_proj", "w_ffn1", "b_ffn1", "w_ffn2", "b_ffn2",
             "w_cv2", "b_cv2"]
    weight_args = [kw[nm] for nm in names]
    weight_bytes = sum(int(np.prod(w.shape)) * w.dtype.itemsize for w in weight_args)

    vmem_limit = _vmem_limit_bytes()
    bt = (_pick_batch_tile(B, N, C1, c, h, num_heads, weight_bytes, vmem_limit // 2)
          if batch_tile is None else batch_tile)
    assert B % bt == 0
    rows = bt * N

    kernel = _make_psa_kernel(bt, N, c, num_heads, key_dim, head_dim)

    # Resident weights: full-array blocks with constant index maps (DMA'd once,
    # revisited across grid steps); default-arg binding avoids late binding.
    weight_specs = [pl.BlockSpec(w.shape, lambda g, nd=w.ndim: (0,) * nd)
                    for w in weight_args]

    # Advisory cost estimate so XLA can overlap the surrounding transposes.
    total_rows = B * N
    flops = (2 * total_rows * (C1 * 2 * c + c * h + c * c + 4 * c * c + 2 * c * C1)
             + 2 * B * num_heads * N * N * (key_dim + head_dim))
    transcend = B * num_heads * N * N + total_rows * (4 * c + C1)
    bytes_accessed = total_rows * C1 * (2 + 4) + weight_bytes
    cost = pl.CostEstimate(flops=int(flops), transcendentals=int(transcend),
                           bytes_accessed=int(bytes_accessed))

    # Activation enters the kernel in bf16 (the MXU feed dtype): halves input DMA.
    x_bf16 = x_blc.astype(jnp.bfloat16)

    return pl.pallas_call(
        kernel,
        out_shape=jax.ShapeDtypeStruct((B, N, C1), jnp.float32),
        grid_spec=pltpu.PrefetchScalarGridSpec(
            num_scalar_prefetch=0,
            grid=(B // bt,),
            in_specs=[pl.BlockSpec((bt, N, C1), lambda g: (g, 0, 0))] + weight_specs,
            out_specs=pl.BlockSpec((bt, N, C1), lambda g: (g, 0, 0)),
            scratch_shapes=[pltpu.VMEM((rows, c), jnp.float32)],
        ),
        compiler_params=pltpu.CompilerParams(
            dimension_semantics=("parallel",),
            vmem_limit_bytes=int(vmem_limit)),
        cost_estimate=cost,
    )(x_bf16, *weight_args)


# -------------------------- parameter setup ----------------------------------

def _conv_bn_init(key, cout, cin_per_group, k):
    """Deterministic Conv + BatchNorm1d (eval) params."""
    kw, kg, kb, km, kv = jax.random.split(key, 5)
    w = 0.1 * jax.random.normal(kw, (cout, cin_per_group, k), jnp.float32)
    gamma = 1.0 + 0.1 * jax.random.normal(kg, (cout,), jnp.float32)
    beta = 0.1 * jax.random.normal(kb, (cout,), jnp.float32)
    mean = 0.1 * jax.random.normal(km, (cout,), jnp.float32)
    var = 1.0 + 0.1 * jnp.abs(jax.random.normal(kv, (cout,), jnp.float32))
    return w, gamma, beta, mean, var


def _fold_1x1(key, cout, cin, eps=1e-5):
    w, g, b, m, v = _conv_bn_init(key, cout, cin, 1)
    s = g / jnp.sqrt(v + eps)
    w_eff = w[:, :, 0] * s[:, None]                    # (cout, cin)
    b_eff = b - m * s
    return w_eff.T, b_eff[None, :]                     # (cin, cout), (1, cout)


def _fold_dw3(key, ch, eps=1e-5):
    w, g, b, m, v = _conv_bn_init(key, ch, 1, 3)
    s = g / jnp.sqrt(v + eps)
    w_eff = w[:, 0, :] * s[:, None]                    # (ch, 3)
    b_eff = b - m * s
    return w_eff.T, b_eff[None, :]                     # (3, ch), (1, ch)


def make_psa1d_params(key, c1, e=0.5):
    c = int(c1 * e)
    num_heads = c // 64
    head_dim = c // num_heads
    key_dim = head_dim // 2
    h = c + 2 * key_dim * num_heads
    keys = jax.random.split(key, 7)
    p = {}
    p["w_cv1"], p["b_cv1"] = _fold_1x1(keys[0], 2 * c, c1)
    p["w_qkv"], p["b_qkv"] = _fold_1x1(keys[1], h, c)
    p["w_pe"], p["b_pe"] = _fold_dw3(keys[2], c)
    p["w_proj"], p["b_proj"] = _fold_1x1(keys[3], c, c)
    p["w_ffn1"], p["b_ffn1"] = _fold_1x1(keys[4], 2 * c, c)
    p["w_ffn2"], p["b_ffn2"] = _fold_1x1(keys[5], c, 2 * c)
    p["w_cv2"], p["b_cv2"] = _fold_1x1(keys[6], c1, 2 * c)
    meta = dict(c=c, num_heads=num_heads, key_dim=key_dim, head_dim=head_dim)
    return p, meta


# ----------------------- pure-JAX reference (NCL) -----------------------------

def _ref_dw3(x, w_t, b_row):
    # x: (B, C, L); w_t: (3, C)
    xp = jnp.pad(x, ((0, 0), (0, 0), (1, 1)))
    w = w_t.T                                          # (C, 3)
    y = (w[None, :, 0:1] * xp[:, :, :-2]
         + w[None, :, 1:2] * xp[:, :, 1:-1]
         + w[None, :, 2:3] * xp[:, :, 2:])
    return y + b_row[0][None, :, None]


def psa1d_reference(x_ncl, p, meta, mm_dtype=jnp.float32):
    """NCL reference.  mm_dtype=bfloat16 matches the kernel's MXU feed
    (bf16 operands, f32 accumulation); mm_dtype=float32 is the full-f32 path."""
    c, nh, kd, hd = meta["c"], meta["num_heads"], meta["key_dim"], meta["head_dim"]
    scale = float(kd) ** -0.5
    B, C1, L = x_ncl.shape
    f32 = jnp.float32

    def conv1x1(x, w, b, act):
        y = jnp.einsum("io,bil->bol", w.astype(mm_dtype), x.astype(mm_dtype),
                       precision="highest", preferred_element_type=f32)
        y = y + b[0][None, :, None]
        return _silu(y) if act else y

    y = conv1x1(x_ncl, p["w_cv1"], p["b_cv1"], True)
    a, b = y[:, :c], y[:, c:]

    qkv = conv1x1(b, p["w_qkv"], p["b_qkv"], False)
    qkv = qkv.reshape(B, nh, 2 * kd + hd, L)
    q, k, v = qkv[:, :, :kd], qkv[:, :, kd:2 * kd], qkv[:, :, 2 * kd:]
    attn = jnp.einsum("bhdn,bhdm->bhnm", q.astype(mm_dtype), k.astype(mm_dtype),
                      precision="highest", preferred_element_type=f32) * scale
    attn = jax.nn.softmax(attn, axis=-1)
    o = jnp.einsum("bhdm,bhnm->bhdn", v.astype(mm_dtype), attn.astype(mm_dtype),
                   precision="highest", preferred_element_type=f32).reshape(B, c, L)
    o = o + _ref_dw3(v.reshape(B, c, L), p["w_pe"], p["b_pe"])
    o = conv1x1(o, p["w_proj"], p["b_proj"], False)
    b = b + o

    f = conv1x1(b, p["w_ffn1"], p["b_ffn1"], True)
    f = conv1x1(f, p["w_ffn2"], p["b_ffn2"], False)
    b = b + f

    return conv1x1(jnp.concatenate([a, b], axis=1), p["w_cv2"], p["b_cv2"], True)


# --------------------------------- main ---------------------------------------

if __name__ == "__main__":
    # num_heads = c // 64 needs c >= 64, so the smallest valid config is c1 = 128
    # (c = 64, 1 head, head_dim = 64, key_dim = 32).  B = 4 exercises the
    # MXU-rows-driven batch folding (all 4 batch elements land in one grid step
    # here since rows stays below the 256-row target).
    B, C1, L = 4, 128, 16
    key = jax.random.PRNGKey(0)
    kx, kp = jax.random.split(key)
    x_ncl = jax.random.normal(kx, (B, C1, L), jnp.float32)       # torch NCL layout

    params, meta = make_psa1d_params(kp, C1, e=0.5)

    x_blc = jnp.transpose(x_ncl, (0, 2, 1))                      # kernel layout (B, L, C)
    out_blc = jax.block_until_ready(psa1d_forward(x_blc, params, **meta))
    out_ncl = np.asarray(jnp.transpose(out_blc, (0, 2, 1)))

    # Tight check vs. a reference run at the kernel's matmul precision (bf16
    # operands, f32 accumulation).  Tolerance accounts for the host-side
    # scale-folding into the Q weights and the EUP approximate reciprocal.
    ref_bf16 = np.asarray(psa1d_reference(x_ncl, params, meta, mm_dtype=jnp.bfloat16))
    np.testing.assert_allclose(out_ncl, ref_bf16, rtol=2e-2, atol=2e-2)

    # Loose check vs. the full-f32 reference, bounding the bf16 MXU-feed drift.
    ref_f32 = np.asarray(psa1d_reference(x_ncl, params, meta, mm_dtype=jnp.float32))
    np.testing.assert_allclose(out_ncl, ref_f32, rtol=5e-2, atol=5e-2)

    print("KERNEL_OK")
</pallas_src>

<mosaic_0001>
module attributes {stable_mosaic.version = 11 : i64} {
  func.func @kernel(%arg0: i32, %arg1: memref<4x16x128xbf16, #tpu.memory_space<vmem>>, %arg2: memref<128x128xbf16, #tpu.memory_space<vmem>>, %arg3: memref<1x128xf32, #tpu.memory_space<vmem>>, %arg4: memref<64x128xbf16, #tpu.memory_space<vmem>>, %arg5: memref<1x128xf32, #tpu.memory_space<vmem>>, %arg6: memref<3x64xf32, #tpu.memory_space<vmem>>, %arg7: memref<1x64xf32, #tpu.memory_space<vmem>>, %arg8: memref<64x64xbf16, #tpu.memory_space<vmem>>, %arg9: memref<1x64xf32, #tpu.memory_space<vmem>>, %arg10: memref<64x128xbf16, #tpu.memory_space<vmem>>, %arg11: memref<1x128xf32, #tpu.memory_space<vmem>>, %arg12: memref<128x64xbf16, #tpu.memory_space<vmem>>, %arg13: memref<1x64xf32, #tpu.memory_space<vmem>>, %arg14: memref<128x128xbf16, #tpu.memory_space<vmem>>, %arg15: memref<1x128xf32, #tpu.memory_space<vmem>>, %arg16: memref<4x16x128xf32, #tpu.memory_space<vmem>>, %arg17: memref<64x64xf32, #tpu.memory_space<vmem>>) attributes {dimension_semantics = [#tpu.dimension_semantics<parallel>], iteration_bounds = array<i64: 1>, scalar_prefetch = 0 : i64, scratch_operands = 1 : i64, tpu.core_type = #tpu.core_type<tc>, window_params = [{transform_indices = @transform_0, window_bounds = array<i64: 4, 16, 128>}, {pipeline_mode = #tpu.pipeline_mode<synchronous>, transform_indices = @transform_1, window_bounds = array<i64: 128, 128>}, {pipeline_mode = #tpu.pipeline_mode<synchronous>, transform_indices = @transform_2, window_bounds = array<i64: 1, 128>}, {pipeline_mode = #tpu.pipeline_mode<synchronous>, transform_indices = @transform_3, window_bounds = array<i64: 64, 128>}, {pipeline_mode = #tpu.pipeline_mode<synchronous>, transform_indices = @transform_4, window_bounds = array<i64: 1, 128>}, {pipeline_mode = #tpu.pipeline_mode<synchronous>, transform_indices = @transform_5, window_bounds = array<i64: 3, 64>}, {pipeline_mode = #tpu.pipeline_mode<synchronous>, transform_indices = @transform_6, window_bounds = array<i64: 1, 64>}, {pipeline_mode = #tpu.pipeline_mode<synchronous>, transform_indices = @transform_7, window_bounds = array<i64: 64, 64>}, {pipeline_mode = #tpu.pipeline_mode<synchronous>, transform_indices = @transform_8, window_bounds = array<i64: 1, 64>}, {pipeline_mode = #tpu.pipeline_mode<synchronous>, transform_indices = @transform_9, window_bounds = array<i64: 64, 128>}, {pipeline_mode = #tpu.pipeline_mode<synchronous>, transform_indices = @transform_10, window_bounds = array<i64: 1, 128>}, {pipeline_mode = #tpu.pipeline_mode<synchronous>, transform_indices = @transform_11, window_bounds = array<i64: 128, 64>}, {pipeline_mode = #tpu.pipeline_mode<synchronous>, transform_indices = @transform_12, window_bounds = array<i64: 1, 64>}, {pipeline_mode = #tpu.pipeline_mode<synchronous>, transform_indices = @transform_13, window_bounds = array<i64: 128, 128>}, {pipeline_mode = #tpu.pipeline_mode<synchronous>, transform_indices = @transform_14, window_bounds = array<i64: 1, 128>}, {transform_indices = @transform_15, window_bounds = array<i64: 4, 16, 128>}]} {
    %c0 = arith.constant 0 : index
    %c0_0 = arith.constant 0 : index
    %c0_1 = arith.constant 0 : index
    %0 = vector.load %arg1[%c0, %c0_0, %c0_1] : memref<4x16x128xbf16, #tpu.memory_space<vmem>>, vector<4x16x128xbf16>
    %1 = vector.shape_cast %0 : vector<4x16x128xbf16> to vector<64x128xbf16>
    %c0_2 = arith.constant 0 : index
    %c0_3 = arith.constant 0 : index
    %2 = vector.load %arg2[%c0_2, %c0_3] : memref<128x128xbf16, #tpu.memory_space<vmem>>, vector<128x128xbf16>
    %cst = arith.constant dense<0.000000e+00> : vector<64x128xf32>
    %3 = tpu.matmul %1, %2, %cst {dimension_numbers = #tpu.dot_dimension_numbers<[1], [0], [0], [1], [0, 0, 1, 1], [], []>} : vector<64x128xbf16>, vector<128x128xbf16>, vector<64x128xf32> -> vector<64x128xf32>
    %c0_4 = arith.constant 0 : index
    %c0_5 = arith.constant 0 : index
    %4 = vector.load %arg3[%c0_4, %c0_5] : memref<1x128xf32, #tpu.memory_space<vmem>>, vector<1x128xf32>
    %5 = vector.broadcast %4 : vector<1x128xf32> to vector<64x128xf32>
    %6 = arith.addf %3, %5 : vector<64x128xf32>
    %7 = arith.negf %6 : vector<64x128xf32>
    %8 = math.exp %7 : vector<64x128xf32>
    %cst_6 = arith.constant 1.000000e+00 : f32
    %9 = vector.broadcast %cst_6 : f32 to vector<64x128xf32>
    %10 = arith.addf %9, %8 : vector<64x128xf32>
    %11 = arith.divf %9, %10 : vector<64x128xf32>
    %12 = arith.mulf %6, %11 : vector<64x128xf32>
    %13 = vector.extract_strided_slice %12 {offsets = [0, 0], sizes = [64, 64], strides = [1, 1]} : vector<64x128xf32> to vector<64x64xf32>
    %14 = vector.extract_strided_slice %12 {offsets = [0, 64], sizes = [64, 64], strides = [1, 1]} : vector<64x128xf32> to vector<64x64xf32>
    %15 = arith.truncf %14 : vector<64x64xf32> to vector<64x64xbf16>
    %c0_7 = arith.constant 0 : index
    %c0_8 = arith.constant 0 : index
    %16 = vector.load %arg4[%c0_7, %c0_8] : memref<64x128xbf16, #tpu.memory_space<vmem>>, vector<64x128xbf16>
    %cst_9 = arith.constant dense<0.000000e+00> : vector<64x128xf32>
    %17 = tpu.matmul %15, %16, %cst_9 {dimension_numbers = #tpu.dot_dimension_numbers<[1], [0], [0], [1], [0, 0, 1, 1], [], []>} : vector<64x64xbf16>, vector<64x128xbf16>, vector<64x128xf32> -> vector<64x128xf32>
    %c0_10 = arith.constant 0 : index
    %c0_11 = arith.constant 0 : index
    %18 = vector.load %arg5[%c0_10, %c0_11] : memref<1x128xf32, #tpu.memory_space<vmem>>, vector<1x128xf32>
    %19 = vector.broadcast %18 : vector<1x128xf32> to vector<64x128xf32>
    %20 = arith.addf %17, %19 : vector<64x128xf32>
    %21 = vector.extract_strided_slice %20 {offsets = [0, 0], sizes = [64, 32], strides = [1, 1]} : vector<64x128xf32> to vector<64x32xf32>
    %22 = vector.extract_strided_slice %20 {offsets = [0, 32], sizes = [64, 32], strides = [1, 1]} : vector<64x128xf32> to vector<64x32xf32>
    %23 = vector.extract_strided_slice %20 {offsets = [0, 64], sizes = [64, 64], strides = [1, 1]} : vector<64x128xf32> to vector<64x64xf32>
    %24 = vector.extract_strided_slice %21 {offsets = [0, 0], sizes = [16, 32], strides = [1, 1]} : vector<64x32xf32> to vector<16x32xf32>
    %25 = vector.extract_strided_slice %22 {offsets = [0, 0], sizes = [16, 32], strides = [1, 1]} : vector<64x32xf32> to vector<16x32xf32>
    %26 = vector.extract_strided_slice %23 {offsets = [0, 0], sizes = [16, 64], strides = [1, 1]} : vector<64x64xf32> to vector<16x64xf32>
    %27 = arith.truncf %24 : vector<16x32xf32> to vector<16x32xbf16>
    %28 = arith.truncf %25 : vector<16x32xf32> to vector<16x32xbf16>
    %cst_12 = arith.constant dense<0.000000e+00> : vector<16x16xf32>
    %29 = tpu.matmul %27, %28, %cst_12 {dimension_numbers = #tpu.dot_dimension_numbers<[1], [1], [0], [0], [0, 0, 1, 0], [], []>} : vector<16x32xbf16>, vector<16x32xbf16>, vector<16x16xf32> -> vector<16x16xf32>
    %cst_13 = arith.constant dense<0xFF800000> : vector<16xf32>
    %30 = vector.multi_reduction <maximumf>, %29, %cst_13 [1] : vector<16x16xf32> to vector<16xf32>
    %31 = vector.shape_cast %30 : vector<16xf32> to vector<16x1xf32>
    %32 = vector.broadcast %31 : vector<16x1xf32> to vector<16x16xf32>
    %33 = arith.subf %29, %32 : vector<16x16xf32>
    %34 = math.exp %33 : vector<16x16xf32>
    %cst_14 = arith.constant dense<0.000000e+00> : vector<16xf32>
    %35 = vector.multi_reduction <add>, %34, %cst_14 [1] : vector<16x16xf32> to vector<16xf32>
    %36 = vector.shape_cast %35 : vector<16xf32> to vector<16x1xf32>
    %37 = tpu.reciprocal %36 {approx = true} : vector<16x1xf32> -> vector<16x1xf32>
    %38 = vector.broadcast %37 : vector<16x1xf32> to vector<16x16xf32>
    %39 = arith.mulf %34, %38 : vector<16x16xf32>
    %40 = arith.truncf %39 : vector<16x16xf32> to vector<16x16xbf16>
    %41 = arith.truncf %26 : vector<16x64xf32> to vector<16x64xbf16>
    %cst_15 = arith.constant dense<0.000000e+00> : vector<16x64xf32>
    %42 = tpu.matmul %40, %41, %cst_15 {dimension_numbers = #tpu.dot_dimension_numbers<[1], [0], [0], [1], [0, 0, 1, 1], [], []>} : vector<16x16xbf16>, vector<16x64xbf16>, vector<16x64xf32> -> vector<16x64xf32>
    %c0_16 = arith.constant 0 : index
    %c0_17 = arith.constant 0 : index
    %43 = vector.load %arg17[%c0_16, %c0_17] : memref<64x64xf32, #tpu.memory_space<vmem>>, vector<16x64xf32>
    tpu.vector_store %arg17[%c0_16, %c0_17], %42 {strides = array<i32>} : memref<64x64xf32, #tpu.memory_space<vmem>>, vector<16x64xf32>,
    %44 = vector.extract_strided_slice %21 {offsets = [16, 0], sizes = [16, 32], strides = [1, 1]} : vector<64x32xf32> to vector<16x32xf32>
    %45 = vector.extract_strided_slice %22 {offsets = [16, 0], sizes = [16, 32], strides = [1, 1]} : vector<64x32xf32> to vector<16x32xf32>
    %46 = vector.extract_strided_slice %23 {offsets = [16, 0], sizes = [16, 64], strides = [1, 1]} : vector<64x64xf32> to vector<16x64xf32>
    %47 = arith.truncf %44 : vector<16x32xf32> to vector<16x32xbf16>
    %48 = arith.truncf %45 : vector<16x32xf32> to vector<16x32xbf16>
    %cst_18 = arith.constant dense<0.000000e+00> : vector<16x16xf32>
    %49 = tpu.matmul %47, %48, %cst_18 {dimension_numbers = #tpu.dot_dimension_numbers<[1], [1], [0], [0], [0, 0, 1, 0], [], []>} : vector<16x32xbf16>, vector<16x32xbf16>, vector<16x16xf32> -> vector<16x16xf32>
    %cst_19 = arith.constant dense<0xFF800000> : vector<16xf32>
    %50 = vector.multi_reduction <maximumf>, %49, %cst_19 [1] : vector<16x16xf32> to vector<16xf32>
    %51 = vector.shape_cast %50 : vector<16xf32> to vector<16x1xf32>
    %52 = vector.broadcast %51 : vector<16x1xf32> to vector<16x16xf32>
    %53 = arith.subf %49, %52 : vector<16x16xf32>
    %54 = math.exp %53 : vector<16x16xf32>
    %cst_20 = arith.constant dense<0.000000e+00> : vector<16xf32>
    %55 = vector.multi_reduction <add>, %54, %cst_20 [1] : vector<16x16xf32> to vector<16xf32>
    %56 = vector.shape_cast %55 : vector<16xf32> to vector<16x1xf32>
    %57 = tpu.reciprocal %56 {approx = true} : vector<16x1xf32> -> vector<16x1xf32>
    %58 = vector.broadcast %57 : vector<16x1xf32> to vector<16x16xf32>
    %59 = arith.mulf %54, %58 : vector<16x16xf32>
    %60 = arith.truncf %59 : vector<16x16xf32> to vector<16x16xbf16>
    %61 = arith.truncf %46 : vector<16x64xf32> to vector<16x64xbf16>
    %cst_21 = arith.constant dense<0.000000e+00> : vector<16x64xf32>
    %62 = tpu.matmul %60, %61, %cst_21 {dimension_numbers = #tpu.dot_dimension_numbers<[1], [0], [0], [1], [0, 0, 1, 1], [], []>} : vector<16x16xbf16>, vector<16x64xbf16>, vector<16x64xf32> -> vector<16x64xf32>
    %c16 = arith.constant 16 : index
    %c0_22 = arith.constant 0 : index
    %63 = vector.load %arg17[%c16, %c0_22] : memref<64x64xf32, #tpu.memory_space<vmem>>, vector<16x64xf32>
    tpu.vector_store %arg17[%c16, %c0_22], %62 {strides = array<i32>} : memref<64x64xf32, #tpu.memory_space<vmem>>, vector<16x64xf32>,
    %64 = vector.extract_strided_slice %21 {offsets = [32, 0], sizes = [16, 32], strides = [1, 1]} : vector<64x32xf32> to vector<16x32xf32>
    %65 = vector.extract_strided_slice %22 {offsets = [32, 0], sizes = [16, 32], strides = [1, 1]} : vector<64x32xf32> to vector<16x32xf32>
    %66 = vector.extract_strided_slice %23 {offsets = [32, 0], sizes = [16, 64], strides = [1, 1]} : vector<64x64xf32> to vector<16x64xf32>
    %67 = arith.truncf %64 : vector<16x32xf32> to vector<16x32xbf16>
    %68 = arith.truncf %65 : vector<16x32xf32> to vector<16x32xbf16>
    %cst_23 = arith.constant dense<0.000000e+00> : vector<16x16xf32>
    %69 = tpu.matmul %67, %68, %cst_23 {dimension_numbers = #tpu.dot_dimension_numbers<[1], [1], [0], [0], [0, 0, 1, 0], [], []>} : vector<16x32xbf16>, vector<16x32xbf16>, vector<16x16xf32> -> vector<16x16xf32>
    %cst_24 = arith.constant dense<0xFF800000> : vector<16xf32>
    %70 = vector.multi_reduction <maximumf>, %69, %cst_24 [1] : vector<16x16xf32> to vector<16xf32>
    %71 = vector.shape_cast %70 : vector<16xf32> to vector<16x1xf32>
    %72 = vector.broadcast %71 : vector<16x1xf32> to vector<16x16xf32>
    %73 = arith.subf %69, %72 : vector<16x16xf32>
    %74 = math.exp %73 : vector<16x16xf32>
    %cst_25 = arith.constant dense<0.000000e+00> : vector<16xf32>
    %75 = vector.multi_reduction <add>, %74, %cst_25 [1] : vector<16x16xf32> to vector<16xf32>
    %76 = vector.shape_cast %75 : vector<16xf32> to vector<16x1xf32>
    %77 = tpu.reciprocal %76 {approx = true} : vector<16x1xf32> -> vector<16x1xf32>
    %78 = vector.broadcast %77 : vector<16x1xf32> to vector<16x16xf32>
    %79 = arith.mulf %74, %78 : vector<16x16xf32>
    %80 = arith.truncf %79 : vector<16x16xf32> to vector<16x16xbf16>
    %81 = arith.truncf %66 : vector<16x64xf32> to vector<16x64xbf16>
    %cst_26 = arith.constant dense<0.000000e+00> : vector<16x64xf32>
    %82 = tpu.matmul %80, %81, %cst_26 {dimension_numbers = #tpu.dot_dimension_numbers<[1], [0], [0], [1], [0, 0, 1, 1], [], []>} : vector<16x16xbf16>, vector<16x64xbf16>, vector<16x64xf32> -> vector<16x64xf32>
    %c32 = arith.constant 32 : index
    %c0_27 = arith.constant 0 : index
    %83 = vector.load %arg17[%c32, %c0_27] : memref<64x64xf32, #tpu.memory_space<vmem>>, vector<16x64xf32>
    tpu.vector_store %arg17[%c32, %c0_27], %82 {strides = array<i32>} : memref<64x64xf32, #tpu.memory_space<vmem>>, vector<16x64xf32>,
    %84 = vector.extract_strided_slice %21 {offsets = [48, 0], sizes = [16, 32], strides = [1, 1]} : vector<64x32xf32> to vector<16x32xf32>
    %85 = vector.extract_strided_slice %22 {offsets = [48, 0], sizes = [16, 32], strides = [1, 1]} : vector<64x32xf32> to vector<16x32xf32>
    %86 = vector.extract_strided_slice %23 {offsets = [48, 0], sizes = [16, 64], strides = [1, 1]} : vector<64x64xf32> to vector<16x64xf32>
    %87 = arith.truncf %84 : vector<16x32xf32> to vector<16x32xbf16>
    %88 = arith.truncf %85 : vector<16x32xf32> to vector<16x32xbf16>
    %cst_28 = arith.constant dense<0.000000e+00> : vector<16x16xf32>
    %89 = tpu.matmul %87, %88, %cst_28 {dimension_numbers = #tpu.dot_dimension_numbers<[1], [1], [0], [0], [0, 0, 1, 0], [], []>} : vector<16x32xbf16>, vector<16x32xbf16>, vector<16x16xf32> -> vector<16x16xf32>
    %cst_29 = arith.constant dense<0xFF800000> : vector<16xf32>
    %90 = vector.multi_reduction <maximumf>, %89, %cst_29 [1] : vector<16x16xf32> to vector<16xf32>
    %91 = vector.shape_cast %90 : vector<16xf32> to vector<16x1xf32>
    %92 = vector.broadcast %91 : vector<16x1xf32> to vector<16x16xf32>
    %93 = arith.subf %89, %92 : vector<16x16xf32>
    %94 = math.exp %93 : vector<16x16xf32>
    %cst_30 = arith.constant dense<0.000000e+00> : vector<16xf32>
    %95 = vector.multi_reduction <add>, %94, %cst_30 [1] : vector<16x16xf32> to vector<16xf32>
    %96 = vector.shape_cast %95 : vector<16xf32> to vector<16x1xf32>
    %97 = tpu.reciprocal %96 {approx = true} : vector<16x1xf32> -> vector<16x1xf32>
    %98 = vector.broadcast %97 : vector<16x1xf32> to vector<16x16xf32>
    %99 = arith.mulf %94, %98 : vector<16x16xf32>
    %100 = arith.truncf %99 : vector<16x16xf32> to vector<16x16xbf16>
    %101 = arith.truncf %86 : vector<16x64xf32> to vector<16x64xbf16>
    %cst_31 = arith.constant dense<0.000000e+00> : vector<16x64xf32>
    %102 = tpu.matmul %100, %101, %cst_31 {dimension_numbers = #tpu.dot_dimension_numbers<[1], [0], [0], [1], [0, 0, 1, 1], [], []>} : vector<16x16xbf16>, vector<16x64xbf16>, vector<16x64xf32> -> vector<16x64xf32>
    %c48 = arith.constant 48 : index
    %c0_32 = arith.constant 0 : index
    %103 = vector.load %arg17[%c48, %c0_32] : memref<64x64xf32, #tpu.memory_space<vmem>>, vector<16x64xf32>
    tpu.vector_store %arg17[%c48, %c0_32], %102 {strides = array<i32>} : memref<64x64xf32, #tpu.memory_space<vmem>>, vector<16x64xf32>,
    %c0_33 = arith.constant 0 : index
    %c0_34 = arith.constant 0 : index
    %104 = vector.load %arg17[%c0_33, %c0_34] : memref<64x64xf32, #tpu.memory_space<vmem>>, vector<64x64xf32>
    %105 = tpu.iota {dimensions = array<i32: 0>} : vector<64x1xi32>
    %c16_i32 = arith.constant 16 : i32
    %c0_i32 = arith.constant 0 : i32
    %106 = arith.cmpi eq, %c16_i32, %c0_i32 : i32
    %c1_i32 = arith.constant 1 : i32
    %107 = arith.select %106, %c1_i32, %c16_i32 : i32
    %108 = vector.broadcast %107 : i32 to vector<64x1xi32>
    %109 = arith.remsi %105, %108 : vector<64x1xi32>
    %c0_i32_35 = arith.constant 0 : i32
    %110 = vector.broadcast %c0_i32_35 : i32 to vector<64x1xi32>
    %111 = arith.cmpi ne, %109, %110 : vector<64x1xi32>
    %c0_i32_36 = arith.constant 0 : i32
    %112 = vector.broadcast %c0_i32_36 : i32 to vector<64x1xi32>
    %113 = arith.cmpi slt, %109, %112 : vector<64x1xi32>
    %c0_i32_37 = arith.constant 0 : i32
    %114 = arith.cmpi slt, %107, %c0_i32_37 : i32
    %115 = vector.broadcast %114 : i1 to vector<64x1xi1>
    %116 = vector.broadcast %115 : vector<64x1xi1> to vector<64x1xi1>
    %117 = arith.xori %113, %116 : vector<64x1xi1>
    %118 = arith.andi %117, %111 : vector<64x1xi1>
    %119 = vector.broadcast %107 : i32 to vector<64x1xi32>
    %120 = arith.addi %109, %119 : vector<64x1xi32>
    %121 = arith.select %118, %120, %109 : vector<64x1xi1>, vector<64x1xi32>
    %c0_i32_38 = arith.constant 0 : i32
    %122 = vector.broadcast %c0_i32_38 : i32 to vector<64x1xi32>
    %123 = arith.cmpi eq, %121, %122 : vector<64x1xi32>
    %c1_i32_39 = arith.constant 1 : i32
    %124 = tpu.dynamic_rotate %23 by %c1_i32_39 dim 0 : vector<64x64xf32>, i32 -> vector<64x64xf32>
    %cst_40 = arith.constant 0.000000e+00 : f32
    %125 = vector.shape_cast %123 : vector<64x1xi1> to vector<64x1xi1>
    %126 = vector.broadcast %125 : vector<64x1xi1> to vector<64x64xi1>
    %127 = vector.broadcast %cst_40 : f32 to vector<64x64xf32>
    %128 = arith.select %126, %127, %124 : vector<64x64xi1>, vector<64x64xf32>
    %c15_i32 = arith.constant 15 : i32
    %129 = vector.broadcast %c15_i32 : i32 to vector<64x1xi32>
    %130 = arith.cmpi eq, %121, %129 : vector<64x1xi32>
    %c63_i32 = arith.constant 63 : i32
    %131 = tpu.dynamic_rotate %23 by %c63_i32 dim 0 : vector<64x64xf32>, i32 -> vector<64x64xf32>
    %cst_41 = arith.constant 0.000000e+00 : f32
    %132 = vector.shape_cast %130 : vector<64x1xi1> to vector<64x1xi1>
    %133 = vector.broadcast %132 : vector<64x1xi1> to vector<64x64xi1>
    %134 = vector.broadcast %cst_41 : f32 to vector<64x64xf32>
    %135 = arith.select %133, %134, %131 : vector<64x64xi1>, vector<64x64xf32>
    %c0_42 = arith.constant 0 : index
    %c0_43 = arith.constant 0 : index
    %136 = vector.load %arg6[%c0_42, %c0_43] : memref<3x64xf32, #tpu.memory_space<vmem>>, vector<1x64xf32>
    %137 = vector.shape_cast %136 : vector<1x64xf32> to vector<64xf32>
    %138 = vector.shape_cast %137 : vector<64xf32> to vector<1x64xf32>
    %139 = vector.broadcast %138 : vector<1x64xf32> to vector<64x64xf32>
    %140 = arith.mulf %128, %139 : vector<64x64xf32>
    %c1 = arith.constant 1 : index
    %c0_44 = arith.constant 0 : index
    %141 = vector.load %arg6[%c1, %c0_44] : memref<3x64xf32, #tpu.memory_space<vmem>>, vector<1x64xf32>
    %142 = vector.shape_cast %141 : vector<1x64xf32> to vector<64xf32>
    %143 = vector.shape_cast %142 : vector<64xf32> to vector<1x64xf32>
    %144 = vector.broadcast %143 : vector<1x64xf32> to vector<64x64xf32>
    %145 = arith.mulf %23, %144 : vector<64x64xf32>
    %146 = arith.addf %140, %145 : vector<64x64xf32>
    %c2 = arith.constant 2 : index
    %c0_45 = arith.constant 0 : index
    %147 = vector.load %arg6[%c2, %c0_45] : memref<3x64xf32, #tpu.memory_space<vmem>>, vector<1x64xf32>
    %148 = vector.shape_cast %147 : vector<1x64xf32> to vector<64xf32>
    %149 = vector.shape_cast %148 : vector<64xf32> to vector<1x64xf32>
    %150 = vector.broadcast %149 : vector<1x64xf32> to vector<64x64xf32>
    %151 = arith.mulf %135, %150 : vector<64x64xf32>
    %152 = arith.addf %146, %151 : vector<64x64xf32>
    %c0_46 = arith.constant 0 : index
    %c0_47 = arith.constant 0 : index
    %153 = vector.load %arg7[%c0_46, %c0_47] : memref<1x64xf32, #tpu.memory_space<vmem>>, vector<1x64xf32>
    %154 = vector.broadcast %153 : vector<1x64xf32> to vector<64x64xf32>
    %155 = arith.addf %152, %154 : vector<64x64xf32>
    %156 = arith.addf %104, %155 : vector<64x64xf32>
    %157 = arith.truncf %156 : vector<64x64xf32> to vector<64x64xbf16>
    %c0_48 = arith.constant 0 : index
    %c0_49 = arith.constant 0 : index
    %158 = vector.load %arg8[%c0_48, %c0_49] : memref<64x64xbf16, #tpu.memory_space<vmem>>, vector<64x64xbf16>
    %cst_50 = arith.constant dense<0.000000e+00> : vector<64x64xf32>
    %159 = tpu.matmul %157, %158, %cst_50 {dimension_numbers = #tpu.dot_dimension_numbers<[1], [0], [0], [1], [0, 0, 1, 1], [], []>} : vector<64x64xbf16>, vector<64x64xbf16>, vector<64x64xf32> -> vector<64x64xf32>
    %c0_51 = arith.constant 0 : index
    %c0_52 = arith.constant 0 : index
    %160 = vector.load %arg9[%c0_51, %c0_52] : memref<1x64xf32, #tpu.memory_space<vmem>>, vector<1x64xf32>
    %161 = vector.broadcast %160 : vector<1x64xf32> to vector<64x64xf32>
    %162 = arith.addf %159, %161 : vector<64x64xf32>
    %163 = arith.addf %14, %162 : vector<64x64xf32>
    %164 = arith.truncf %163 : vector<64x64xf32> to vector<64x64xbf16>
    %c0_53 = arith.constant 0 : index
    %c0_54 = arith.constant 0 : index
    %165 = vector.load %arg10[%c0_53, %c0_54] : memref<64x128xbf16, #tpu.memory_space<vmem>>, vector<64x128xbf16>
    %cst_55 = arith.constant dense<0.000000e+00> : vector<64x128xf32>
    %166 = tpu.matmul %164, %165, %cst_55 {dimension_numbers = #tpu.dot_dimension_numbers<[1], [0], [0], [1], [0, 0, 1, 1], [], []>} : vector<64x64xbf16>, vector<64x128xbf16>, vector<64x128xf32> -> vector<64x128xf32>
    %c0_56 = arith.constant 0 : index
    %c0_57 = arith.constant 0 : index
    %167 = vector.load %arg11[%c0_56, %c0_57] : memref<1x128xf32, #tpu.memory_space<vmem>>, vector<1x128xf32>
    %168 = vector.broadcast %167 : vector<1x128xf32> to vector<64x128xf32>
    %169 = arith.addf %166, %168 : vector<64x128xf32>
    %170 = arith.negf %169 : vector<64x128xf32>
    %171 = math.exp %170 : vector<64x128xf32>
    %cst_58 = arith.constant 1.000000e+00 : f32
    %172 = vector.broadcast %cst_58 : f32 to vector<64x128xf32>
    %173 = arith.addf %172, %171 : vector<64x128xf32>
    %174 = arith.divf %172, %173 : vector<64x128xf32>
    %175 = arith.mulf %169, %174 : vector<64x128xf32>
    %176 = arith.truncf %175 : vector<64x128xf32> to vector<64x128xbf16>
    %c0_59 = arith.constant 0 : index
    %c0_60 = arith.constant 0 : index
    %177 = vector.load %arg12[%c0_59, %c0_60] : memref<128x64xbf16, #tpu.memory_space<vmem>>, vector<128x64xbf16>
    %cst_61 = arith.constant dense<0.000000e+00> : vector<64x64xf32>
    %178 = tpu.matmul %176, %177, %cst_61 {dimension_numbers = #tpu.dot_dimension_numbers<[1], [0], [0], [1], [0, 0, 1, 1], [], []>} : vector<64x128xbf16>, vector<128x64xbf16>, vector<64x64xf32> -> vector<64x64xf32>
    %c0_62 = arith.constant 0 : index
    %c0_63 = arith.constant 0 : index
    %179 = vector.load %arg13[%c0_62, %c0_63] : memref<1x64xf32, #tpu.memory_space<vmem>>, vector<1x64xf32>
    %180 = vector.broadcast %179 : vector<1x64xf32> to vector<64x64xf32>
    %181 = arith.addf %178, %180 : vector<64x64xf32>
    %182 = arith.addf %163, %181 : vector<64x64xf32>
    %183 = tpu.concatenate %13, %182 in 1 : vector<64x64xf32>, vector<64x64xf32> -> vector<64x128xf32>
    %184 = arith.truncf %183 : vector<64x128xf32> to vector<64x128xbf16>
    %c0_64 = arith.constant 0 : index
    %c0_65 = arith.constant 0 : index
    %185 = vector.load %arg14[%c0_64, %c0_65] : memref<128x128xbf16, #tpu.memory_space<vmem>>, vector<128x128xbf16>
    %cst_66 = arith.constant dense<0.000000e+00> : vector<64x128xf32>
    %186 = tpu.matmul %184, %185, %cst_66 {dimension_numbers = #tpu.dot_dimension_numbers<[1], [0], [0], [1], [0, 0, 1, 1], [], []>} : vector<64x128xbf16>, vector<128x128xbf16>, vector<64x128xf32> -> vector<64x128xf32>
    %c0_67 = arith.constant 0 : index
    %c0_68 = arith.constant 0 : index
    %187 = vector.load %arg15[%c0_67, %c0_68] : memref<1x128xf32, #tpu.memory_space<vmem>>, vector<1x128xf32>
    %188 = vector.broadcast %187 : vector<1x128xf32> to vector<64x128xf32>
    %189 = arith.addf %186, %188 : vector<64x128xf32>
    %190 = arith.negf %189 : vector<64x128xf32>
    %191 = math.exp %190 : vector<64x128xf32>
    %cst_69 = arith.constant 1.000000e+00 : f32
    %192 = vector.broadcast %cst_69 : f32 to vector<64x128xf32>
    %193 = arith.addf %192, %191 : vector<64x128xf32>
    %194 = arith.divf %192, %193 : vector<64x128xf32>
    %195 = arith.mulf %189, %194 : vector<64x128xf32>
    %196 = vector.shape_cast %195 : vector<64x128xf32> to vector<4x16x128xf32>
    %c0_70 = arith.constant 0 : index
    %c0_71 = arith.constant 0 : index
    %c0_72 = arith.constant 0 : index
    %197 = vector.load %arg16[%c0_70, %c0_71, %c0_72] : memref<4x16x128xf32, #tpu.memory_space<vmem>>, vector<4x16x128xf32>
    tpu.vector_store %arg16[%c0_70, %c0_71, %c0_72], %196 {strides = array<i32>} : memref<4x16x128xf32, #tpu.memory_space<vmem>>, vector<4x16x128xf32>,
    return
  }
  func.func @transform_0(%arg0: i32) -> (i32, i32, i32) {
    %c0_i32 = arith.constant 0 : i32
    %c0_i32_0 = arith.constant 0 : i32
    %c0_i32_1 = arith.constant 0 : i32
    return %arg0, %c0_i32, %c0_i32_0 : i32, i32, i32
  }
  func.func @transform_1(%arg0: i32) -> (i32, i32) {
    %c0_i32 = arith.constant 0 : i32
    %c0_i32_0 = arith.constant 0 : i32
    %c0_i32_1 = arith.constant 0 : i32
    return %c0_i32, %c0_i32_0 : i32, i32
  }
  func.func @transform_2(%arg0: i32) -> (i32, i32) {
    %c0_i32 = arith.constant 0 : i32
    %c0_i32_0 = arith.constant 0 : i32
    %c0_i32_1 = arith.constant 0 : i32
    return %c0_i32, %c0_i32_0 : i32, i32
  }
  func.func @transform_3(%arg0: i32) -> (i32, i32) {
    %c0_i32 = arith.constant 0 : i32
    %c0_i32_0 = arith.constant 0 : i32
    %c0_i32_1 = arith.constant 0 : i32
    return %c0_i32, %c0_i32_0 : i32, i32
  }
  func.func @transform_4(%arg0: i32) -> (i32, i32) {
    %c0_i32 = arith.constant 0 : i32
    %c0_i32_0 = arith.constant 0 : i32
    %c0_i32_1 = arith.constant 0 : i32
    return %c0_i32, %c0_i32_0 : i32, i32
  }
  func.func @transform_5(%arg0: i32) -> (i32, i32) {
    %c0_i32 = arith.constant 0 : i32
    %c0_i32_0 = arith.constant 0 : i32
    %c0_i32_1 = arith.constant 0 : i32
    return %c0_i32, %c0_i32_0 : i32, i32
  }
  func.func @transform_6(%arg0: i32) -> (i32, i32) {
    %c0_i32 = arith.constant 0 : i32
    %c0_i32_0 = arith.constant 0 : i32
    %c0_i32_1 = arith.constant 0 : i32
    return %c0_i32, %c0_i32_0 : i32, i32
  }
  func.func @transform_7(%arg0: i32) -> (i32, i32) {
    %c0_i32 = arith.constant 0 : i32
    %c0_i32_0 = arith.constant 0 : i32
    %c0_i32_1 = arith.constant 0 : i32
    return %c0_i32, %c0_i32_0 : i32, i32
  }
  func.func @transform_8(%arg0: i32) -> (i32, i32) {
    %c0_i32 = arith.constant 0 : i32
    %c0_i32_0 = arith.constant 0 : i32
    %c0_i32_1 = arith.constant 0 : i32
    return %c0_i32, %c0_i32_0 : i32, i32
  }
  func.func @transform_9(%arg0: i32) -> (i32, i32) {
    %c0_i32 = arith.constant 0 : i32
    %c0_i32_0 = arith.constant 0 : i32
    %c0_i32_1 = arith.constant 0 : i32
    return %c0_i32, %c0_i32_0 : i32, i32
  }
  func.func @transform_10(%arg0: i32) -> (i32, i32) {
    %c0_i32 = arith.constant 0 : i32
    %c0_i32_0 = arith.constant 0 : i32
    %c0_i32_1 = arith.constant 0 : i32
    return %c0_i32, %c0_i32_0 : i32, i32
  }
  func.func @transform_11(%arg0: i32) -> (i32, i32) {
    %c0_i32 = arith.constant 0 : i32
    %c0_i32_0 = arith.constant 0 : i32
    %c0_i32_1 = arith.constant 0 : i32
    return %c0_i32, %c0_i32_0 : i32, i32
  }
  func.func @transform_12(%arg0: i32) -> (i32, i32) {
    %c0_i32 = arith.constant 0 : i32
    %c0_i32_0 = arith.constant 0 : i32
    %c0_i32_1 = arith.constant 0 : i32
    return %c0_i32, %c0_i32_0 : i32, i32
  }
  func.func @transform_13(%arg0: i32) -> (i32, i32) {
    %c0_i32 = arith.constant 0 : i32
    %c0_i32_0 = arith.constant 0 : i32
    %c0_i32_1 = arith.constant 0 : i32
    return %c0_i32, %c0_i32_0 : i32, i32
  }
  func.func @transform_14(%arg0: i32) -> (i32, i32) {
    %c0_i32 = arith.constant 0 : i32
    %c0_i32_0 = arith.constant 0 : i32
    %c0_i32_1 = arith.constant 0 : i32
    return %c0_i32, %c0_i32_0 : i32, i32
  }
  func.func @transform_15(%arg0: i32) -> (i32, i32, i32) {
    %c0_i32 = arith.constant 0 : i32
    %c0_i32_0 = arith.constant 0 : i32
    %c0_i32_1 = arith.constant 0 : i32
    return %arg0, %c0_i32, %c0_i32_0 : i32, i32, i32
  }
}

</mosaic_0001>

<llo_original>
// kernel: tpu_custom_call.1
$region0: #{tpu_custom_call.1}
  #allocation0 [shape = 'u32[]', space=smem, size = 0x4, offset = 0x4, fixed_abs, tag = 'smem constant byte address 0x4 - core index']
  #allocation1 [shape = 'u32[144,128]{1,0:T(1,128)}', space=vmem, size = 0x12000, scoped, tag = 'internal scratch']
  #allocation2 [shape = 'f32[64,64]{1,0:T(8,128)}', space=vmem, size = 0x8000, scoped, tag = 'scratch operand']
  %s0 = inlined_call_operand.vmem [shape: bf16[4,16,128], index: 0, kind: input, shape index: {}]
  %s1 = inlined_call_operand.vmem [shape: bf16[128,128], index: 1, kind: input, shape index: {}]
  %s2 = inlined_call_operand.vmem [shape: f32[1,128], index: 2, kind: input, shape index: {}]
  %s3 = inlined_call_operand.hbm [shape: bf16[64,128], index: 3, kind: input, shape index: {}]
  %s4 = inlined_call_operand.vmem [shape: f32[1,128], index: 4, kind: input, shape index: {}]
  %s5 = inlined_call_operand.vmem [shape: f32[3,64], index: 5, kind: input, shape index: {}]
  %s6 = inlined_call_operand.vmem [shape: f32[1,64], index: 6, kind: input, shape index: {}]
  %s7 = inlined_call_operand.hbm [shape: bf16[64,64], index: 7, kind: input, shape index: {}]
  %s8 = inlined_call_operand.vmem [shape: f32[1,64], index: 8, kind: input, shape index: {}]
  %s9 = inlined_call_operand.hbm [shape: bf16[64,128], index: 9, kind: input, shape index: {}]
  %s10 = inlined_call_operand.vmem [shape: f32[1,128], index: 10, kind: input, shape index: {}]
  %s11 = inlined_call_operand.vmem [shape: bf16[128,64], index: 11, kind: input, shape index: {}]
  %s12 = inlined_call_operand.vmem [shape: f32[1,64], index: 12, kind: input, shape index: {}]
  %s13 = inlined_call_operand.hbm [shape: bf16[128,128], index: 13, kind: input, shape index: {}]
  %s14 = inlined_call_operand.vmem [shape: f32[1,128], index: 14, kind: input, shape index: {}]
  %s15 = inlined_call_operand.hbm [shape: f32[4,16,128], index: 15, kind: output, shape index: {}]
  %s16 = sld [smem:[#allocation0]]
  $region86: #{tpu_custom_call.1} parent=0
    _
  %s18 = ssub.s32 1, %s16
  %s19 = scalar_select 0, %s18, %s16
  $region1: #{tpu_custom_call.1} parent=0
    #allocation3 [shape = 'u8[16384]{0}', space=vmem, size = 0x4000, scoped, tag = 'input window, operand 3, single buffered']
    #allocation4 [shape = 's32[1]{0}', space=sflag, size = 0x4, scoped, tag = 'scoped memory for tpu_custom_call.1']
    #allocation5 [shape = 's32[1]{0}', space=sflag, size = 0x4, scoped, tag = 'scoped memory for tpu_custom_call.1']
    #allocation6 [shape = 'u8[16384]{0}', space=vmem, size = 0x4000, scoped, tag = 'input window, operand 7, single buffered']
    #allocation7 [shape = 's32[1]{0}', space=sflag, size = 0x4, scoped, tag = 'scoped memory for tpu_custom_call.1']
    #allocation8 [shape = 'u8[16384]{0}', space=vmem, size = 0x4000, scoped, tag = 'input window, operand 9, single buffered']
    #allocation9 [shape = 'u8[32768]{0}', space=vmem, size = 0x8000, scoped, tag = 'input window, operand 13, single buffered']
    #allocation10 [shape = 's32[1]{0}', space=sflag, size = 0x4, scoped, tag = 'scoped memory for tpu_custom_call.1']
    #allocation11 [shape = 'u8[32768]{0}', space=vmem, size = 0x8000, scoped, tag = 'output window, operand 0, single buffered']
    %20 = vsyncpa [#allocation4], 0
    %21 = vsyncpa [#allocation7], 0
    %22 = vsyncpa [#allocation10], 0
    %23 = vsyncpa [#allocation5], 0
    // Predicated region
    $region2: #{tpu_custom_call.1} parent=1 // pred_check
      _
    $region3: #{tpu_custom_call.1} parent=1 // pred_check_branch
      %25 = sbr.rel (0) target = $region5
    $region4: #{tpu_custom_call.1} parent=1 // pred_region
      _
    $region5: #{tpu_custom_call.1} parent=1 // pred_fallthru
      _
    // Predicated region
    $region6: #{tpu_custom_call.1} parent=1 // pred_check
      _
    $region7: #{tpu_custom_call.1} parent=1 // pred_check_branch
      %27 = sbr.rel (0) target = $region9
    $region8: #{tpu_custom_call.1} parent=1 // pred_region
      _
    $region9: #{tpu_custom_call.1} parent=1 // pred_fallthru
      _
    // Predicated region
    $region10: #{tpu_custom_call.1} parent=1 // pred_check
      _
    $region11: #{tpu_custom_call.1} parent=1 // pred_check_branch
      %29 = sbr.rel (0) target = $region13
    $region12: #{tpu_custom_call.1} parent=1 // pred_region
      _
    $region13: #{tpu_custom_call.1} parent=1 // pred_fallthru
      _
    // Predicated region
    $region14: #{tpu_custom_call.1} parent=1 // pred_check
      _
    $region15: #{tpu_custom_call.1} parent=1 // pred_check_branch
      %31 = sbr.rel (0) target = $region17
    $region16: #{tpu_custom_call.1} parent=1 // pred_region
      %s33 = ssub.s32 512, 512
      %34 = vsyncadd [#allocation4], %s33
      %s35 = sshll.u32 [#allocation3], 4
      %s36 = int_to_ptr.vmem [resolvable:$true] %s35
      %41 = dma.hbm_to_vmem [thread:$0]  %s3, 512, %s36, [#allocation4], 64, 64, 4
    $region17: #{tpu_custom_call.1} parent=1 // pred_fallthru
      _
    // Predicated region
    $region18: #{tpu_custom_call.1} parent=1 // pred_check
      _
    $region19: #{tpu_custom_call.1} parent=1 // pred_check_branch
      %43 = sbr.rel (0) target = $region21
    $region20: #{tpu_custom_call.1} parent=1 // pred_region
      _
    $region21: #{tpu_custom_call.1} parent=1 // pred_fallthru
      _
    // Predicated region
    $region22: #{tpu_custom_call.1} parent=1 // pred_check
      _
    $region23: #{tpu_custom_call.1} parent=1 // pred_check_branch
      %45 = sbr.rel (0) target = $region25
    $region24: #{tpu_custom_call.1} parent=1 // pred_region
      _
    $region25: #{tpu_custom_call.1} parent=1 // pred_fallthru
      _
    // Predicated region
    $region26: #{tpu_custom_call.1} parent=1 // pred_check
      _
    $region27: #{tpu_custom_call.1} parent=1 // pred_check_branch
      %47 = sbr.rel (0) target = $region29
    $region28: #{tpu_custom_call.1} parent=1 // pred_region
      _
    $region29: #{tpu_custom_call.1} parent=1 // pred_fallthru
      _
    // Predicated region
    $region30: #{tpu_custom_call.1} parent=1 // pred_check
      _
    $region31: #{tpu_custom_call.1} parent=1 // pred_check_branch
      %49 = sbr.rel (0) target = $region33
    $region32: #{tpu_custom_call.1} parent=1 // pred_region
      %s51 = ssub.s32 512, 512
      %52 = vsyncadd [#allocation7], %s51
      %s53 = sshll.u32 [#allocation6], 4
      %s54 = int_to_ptr.vmem [resolvable:$true] %s53
      %59 = dma.hbm_to_vmem [thread:$0]  %s7, 512, %s54, [#allocation7], 64, 64, 4
    $region33: #{tpu_custom_call.1} parent=1 // pred_fallthru
      _
    // Predicated region
    $region34: #{tpu_custom_call.1} parent=1 // pred_check
      _
    $region35: #{tpu_custom_call.1} parent=1 // pred_check_branch
      %61 = sbr.rel (0) target = $region37
    $region36: #{tpu_custom_call.1} parent=1 // pred_region
      _
    $region37: #{tpu_custom_call.1} parent=1 // pred_fallthru
      _
    // Predicated region
    $region38: #{tpu_custom_call.1} parent=1 // pred_check
      _
    $region39: #{tpu_custom_call.1} parent=1 // pred_check_branch
      %63 = sbr.rel (0) target = $region41
    $region40: #{tpu_custom_call.1} parent=1 // pred_region
      %s65 = ssub.s32 512, 512
      %66 = vsyncadd [#allocation7], %s65
      %s67 = sshll.u32 [#allocation8], 4
      %s68 = int_to_ptr.vmem [resolvable:$true] %s67
      %73 = dma.hbm_to_vmem [thread:$0]  %s9, 512, %s68, [#allocation7], 64, 64, 4
    $region41: #{tpu_custom_call.1} parent=1 // pred_fallthru
      _
    // Predicated region
    $region42: #{tpu_custom_call.1} parent=1 // pred_check
      _
    $region43: #{tpu_custom_call.1} parent=1 // pred_check_branch
      %75 = sbr.rel (0) target = $region45
    $region44: #{tpu_custom_call.1} parent=1 // pred_region
      _
    $region45: #{tpu_custom_call.1} parent=1 // pred_fallthru
      _
    // Predicated region
    $region46: #{tpu_custom_call.1} parent=1 // pred_check
      _
    $region47: #{tpu_custom_call.1} parent=1 // pred_check_branch
      %77 = sbr.rel (0) target = $region49
    $region48: #{tpu_custom_call.1} parent=1 // pred_region
      _
    $region49: #{tpu_custom_call.1} parent=1 // pred_fallthru
      _
    // Predicated region
    $region50: #{tpu_custom_call.1} parent=1 // pred_check
      _
    $region51: #{tpu_custom_call.1} parent=1 // pred_check_branch
      %79 = sbr.rel (0) target = $region53
    $region52: #{tpu_custom_call.1} parent=1 // pred_region
      _
    $region53: #{tpu_custom_call.1} parent=1 // pred_fallthru
      _
    // Predicated region
    $region54: #{tpu_custom_call.1} parent=1 // pred_check
      _
    $region55: #{tpu_custom_call.1} parent=1 // pred_check_branch
      %81 = sbr.rel (0) target = $region57
    $region56: #{tpu_custom_call.1} parent=1 // pred_region
      %s83 = ssub.s32 1024, 1024
      %84 = vsyncadd [#allocation10], %s83
      %s85 = sshll.u32 [#allocation9], 4
      %s86 = int_to_ptr.vmem [resolvable:$true] %s85
      %91 = dma.hbm_to_vmem [thread:$0]  %s13, 1024, %s86, [#allocation10], 64, 64, 4
    $region57: #{tpu_custom_call.1} parent=1 // pred_fallthru
      _
    // Predicated region
    $region58: #{tpu_custom_call.1} parent=1 // pred_check
      _
    $region59: #{tpu_custom_call.1} parent=1 // pred_check_branch
      %93 = sbr.rel (0) target = $region61
    $region60: #{tpu_custom_call.1} parent=1 // pred_region
      _
    $region61: #{tpu_custom_call.1} parent=1 // pred_fallthru
      _
    // Predicated region
    $region62: #{tpu_custom_call.1} parent=1 // pred_check
      _
    $region63: #{tpu_custom_call.1} parent=1 // pred_check_branch
      %95 = sbr.rel (0) target = $region65
    $region64: #{tpu_custom_call.1} parent=1 // pred_region
      %96 = dma.done [#allocation4], 512
    $region65: #{tpu_custom_call.1} parent=1 // pred_fallthru
      _
    // Predicated region
    $region66: #{tpu_custom_call.1} parent=1 // pred_check
      _
    $region67: #{tpu_custom_call.1} parent=1 // pred_check_branch
      %98 = sbr.rel (0) target = $region69
    $region68: #{tpu_custom_call.1} parent=1 // pred_region
      %99 = dma.done [#allocation7], 512
    $region69: #{tpu_custom_call.1} parent=1 // pred_fallthru
      _
    // Predicated region
    $region70: #{tpu_custom_call.1} parent=1 // pred_check
      _
    $region71: #{tpu_custom_call.1} parent=1 // pred_check_branch
      %101 = sbr.rel (0) target = $region73
    $region72: #{tpu_custom_call.1} parent=1 // pred_region
      %102 = dma.done [#allocation7], 512
    $region73: #{tpu_custom_call.1} parent=1 // pred_fallthru
      _
    // Predicated region
    $region74: #{tpu_custom_call.1} parent=1 // pred_check
      _
    $region75: #{tpu_custom_call.1} parent=1 // pred_check_branch
      %104 = sbr.rel (0) target = $region77
    $region76: #{tpu_custom_call.1} parent=1 // pred_region
      %105 = dma.done [#allocation10], 1024
    $region77: #{tpu_custom_call.1} parent=1 // pred_fallthru
      _
    %v107 = vld [vmem:[%s0] sm:$0xf]
    %v108 = vld [vmem:[%s0 + $0x4] sm:$0xf]
    %v109 = vld [vmem:[%s0 + $0x8] sm:$0xf]
    %v110 = vld [vmem:[%s0 + $0xc] sm:$0xf]
    %v111 = vld [vmem:[%s0 + $0x10] sm:$0xf]
    %v112 = vld [vmem:[%s0 + $0x14] sm:$0xf]
    %v113 = vld [vmem:[%s0 + $0x18] sm:$0xf]
    %v114 = vld [vmem:[%s0 + $0x1c] sm:$0xf]
    %v115 = vld [vmem:[%s1] sm:$0xf]
    %v116 = vld [vmem:[%s1 + $0x4] sm:$0xf]
    %v117 = vld [vmem:[%s1 + $0x8] sm:$0xf]
    %v118 = vld [vmem:[%s1 + $0xc] sm:$0xf]
    %v119 = vld [vmem:[%s1 + $0x10] sm:$0xf]
    %v120 = vld [vmem:[%s1 + $0x14] sm:$0xf]
    %v121 = vld [vmem:[%s1 + $0x18] sm:$0xf]
    %v122 = vld [vmem:[%s1 + $0x1c] sm:$0xf]
    %v123 = vld [vmem:[%s1 + $0x20] sm:$0xf]
    %v124 = vld [vmem:[%s1 + $0x24] sm:$0xf]
    %v125 = vld [vmem:[%s1 + $0x28] sm:$0xf]
    %v126 = vld [vmem:[%s1 + $0x2c] sm:$0xf]
    %v127 = vld [vmem:[%s1 + $0x30] sm:$0xf]
    %v128 = vld [vmem:[%s1 + $0x34] sm:$0xf]
    %v129 = vld [vmem:[%s1 + $0x38] sm:$0xf]
    %v130 = vld [vmem:[%s1 + $0x3c] sm:$0xf]
    %v131 = vld [vmem:[%s2] sm:$0x1]
    %v133 = vlaneseq
    %v134 = vshrl.u32 %v133, 7
    %v135 = vsub.s32 0, %v134
    %v136 = vrot.slane %v131, %v135
    %v146 = vunpack.c.l.b16 %v107
    %v147 = vunpack.c.l.b16 %v108
    %v148 = vunpack.c.l.b16 %v109
    %v149 = vunpack.c.l.b16 %v110
    %v150 = vunpack.c.l.b16 %v111
    %v151 = vunpack.c.l.b16 %v112
    %v152 = vunpack.c.l.b16 %v113
    %v153 = vunpack.c.l.b16 %v114
    %v154 = vpack.c.b16 %v147, %v146
    %v155 = vpack.c.b16 %v149, %v148
    %v156 = vpack.c.b16 %v151, %v150
    %v157 = vpack.c.b16 %v153, %v152
    %v178 = vunpack.c.l.b16 %v115
    %v179 = vunpack.c.l.b16 %v116
    %v180 = vunpack.c.l.b16 %v117
    %v181 = vunpack.c.l.b16 %v118
    %v182 = vunpack.c.l.b16 %v119
    %v183 = vunpack.c.l.b16 %v120
    %v184 = vunpack.c.l.b16 %v121
    %v185 = vunpack.c.l.b16 %v122
    %v186 = vunpack.c.l.b16 %v123
    %v187 = vunpack.c.l.b16 %v124
    %v188 = vunpack.c.l.b16 %v125
    %v189 = vunpack.c.l.b16 %v126
    %v190 = vunpack.c.l.b16 %v127
    %v191 = vunpack.c.l.b16 %v128
    %v192 = vunpack.c.l.b16 %v129
    %v193 = vunpack.c.l.b16 %v130
    %v194 = vpack.c.b16 %v179, %v178
    %v195 = vpack.c.b16 %v181, %v180
    %v196 = vpack.c.b16 %v183, %v182
    %v197 = vpack.c.b16 %v185, %v184
    %v198 = vpack.c.b16 %v187, %v186
    %v199 = vpack.c.b16 %v189, %v188
    %v200 = vpack.c.b16 %v191, %v190
    %v201 = vpack.c.b16 %v193, %v192
    %210 = vmatprep.subr.bf16.mxu0 0
    %211 = vmatpush1.bf16.msra.mxu0 %v201
    %212 = vmatprep.subr.bf16.mxu0 0
    %213 = vmatpush1.bf16.msra.mxu0 %v200
    %214 = vmatprep.subr.bf16.mxu0 0
    %215 = vmatpush1.bf16.msra.mxu0 %v199
    %216 = vmatprep.subr.bf16.mxu0 0
    %217 = vmatpush1.bf16.msra.mxu0 %v198
    %218 = vmatprep.subr.bf16.mxu0 0
    %219 = vmatpush1.bf16.msra.mxu0 %v197
    %220 = vmatprep.subr.bf16.mxu0 0
    %221 = vmatpush1.bf16.msra.mxu0 %v196
    %222 = vmatprep.subr.bf16.mxu0 0
    %223 = vmatpush1.bf16.msra.mxu0 %v195
    %224 = vmatprep.subr.bf16.mxu0 0
    %225 = vmatpush1.bf16.msra.mxu0 %v194
    %226 = vmatprep.subr.bf16.mxu0 0
    %227 = vmatpush2.bf16.msra.mxu0 0
    %228 = vmatprep.subr.bf16.mxu0 0
    %229 = vmatpush2.bf16.msra.mxu0 0
    %230 = vmatprep.subr.bf16.mxu0 0
    %231 = vmatpush2.bf16.msra.mxu0 0
    %232 = vmatprep.subr.bf16.mxu0 0
    %233 = vmatpush2.bf16.msra.mxu0 0
    %234 = vmatprep.subr.bf16.mxu0 0
    %235 = vmatpush2.bf16.msra.mxu0 0
    %236 = vmatprep.subr.bf16.mxu0 0
    %237 = vmatpush2.bf16.msra.mxu0 0
    %238 = vmatprep.subr.bf16.mxu0 0
    %239 = vmatpush2.bf16.msra.mxu0 0
    %240 = vmatprep.subr.bf16.mxu0 0
    %241 = vmatpush2.bf16.msra.mxu0 0
    %242 = vmatprep.mubr.bf16.mxu0 0
    %243 = vmatmul.mubr.bf16.gmra.mxu0 %v154
    %v244 = vpop.f32.mrf.mxu0
    %v245 = vadd.f32 %v136, %v244
    %v246 = vpop.f32.mrf.mxu0
    %v247 = vpop.f32.mrf.mxu0
    %v248 = vadd.f32 %v136, %v247
    %v249 = vpop.f32.mrf.mxu0
    %250 = vmatprep.mubr.bf16.mxu0 0
    %251 = vmatmul.mubr.bf16.gmra.mxu0 %v155
    %v252 = vpop.f32.mrf.mxu0
    %v253 = vadd.f32 %v136, %v252
    %v254 = vpop.f32.mrf.mxu0
    %v255 = vpop.f32.mrf.mxu0
    %v256 = vadd.f32 %v136, %v255
    %v257 = vpop.f32.mrf.mxu0
    %258 = vmatprep.mubr.bf16.mxu0 0
    %259 = vmatmul.mubr.bf16.gmra.mxu0 %v156
    %v260 = vpop.f32.mrf.mxu0
    %v261 = vadd.f32 %v136, %v260
    %v262 = vpop.f32.mrf.mxu0
    %v263 = vpop.f32.mrf.mxu0
    %v264 = vadd.f32 %v136, %v263
    %v265 = vpop.f32.mrf.mxu0
    %266 = vmatprep.mubr.bf16.mxu0 0
    %267 = vmatmul.mubr.bf16.gmra.mxu0 %v157
    %v268 = vpop.f32.mrf.mxu0
    %v269 = vadd.f32 %v136, %v268
    %v270 = vpop.f32.mrf.mxu0
    %v271 = vpop.f32.mrf.mxu0
    %v272 = vadd.f32 %v136, %v271
    %v273 = vpop.f32.mrf.mxu0
    %274 = vdwg.mxu0
    %v275 = vxor.u32 %v245, 2147483648
    %v276 = vxor.u32 %v248, 2147483648
    %v277 = vxor.u32 %v253, 2147483648
    %v278 = vxor.u32 %v256, 2147483648
    %v279 = vxor.u32 %v261, 2147483648
    %v280 = vxor.u32 %v264, 2147483648
    %v281 = vxor.u32 %v269, 2147483648
    %v282 = vxor.u32 %v272, 2147483648
    %v283 = vmul.f32 %v275, 1.442695
    %v284 = vpow.pop %v283
    %v285 = vmul.f32 %v276, 1.442695
    %v286 = vpow.pop %v285
    %v287 = vmul.f32 %v277, 1.442695
    %v288 = vpow.pop %v287
    %v289 = vmul.f32 %v278, 1.442695
    %v290 = vpow.pop %v289
    %v291 = vmul.f32 %v279, 1.442695
    %v292 = vpow.pop %v291
    %v293 = vmul.f32 %v280, 1.442695
    %v294 = vpow.pop %v293
    %v295 = vmul.f32 %v281, 1.442695
    %v296 = vpow.pop %v295
    %v297 = vmul.f32 %v282, 1.442695
    %v298 = vpow.pop %v297
    %v299 = vadd.f32 %v284, 1.0
    %v300 = vadd.f32 %v286, 1.0
    %v301 = vadd.f32 %v288, 1.0
    %v302 = vadd.f32 %v290, 1.0
    %v303 = vadd.f32 %v292, 1.0
    %v304 = vadd.f32 %v294, 1.0
    %v305 = vadd.f32 %v296, 1.0
    %v306 = vadd.f32 %v298, 1.0
    %v307 = vrcp.pop %v299
    %v308 = vmul.f32 1.0, %v307
    %v309 = vrcp.pop %v300
    %v310 = vmul.f32 1.0, %v309
    %v311 = vrcp.pop %v301
    %v312 = vmul.f32 1.0, %v311
    %v313 = vrcp.pop %v302
    %v314 = vmul.f32 1.0, %v313
    %v315 = vrcp.pop %v303
    %v316 = vmul.f32 1.0, %v315
    %v317 = vrcp.pop %v304
    %v318 = vmul.f32 1.0, %v317
    %v319 = vrcp.pop %v305
    %v320 = vmul.f32 1.0, %v319
    %v321 = vrcp.pop %v306
    %v322 = vmul.f32 1.0, %v321
    %v323 = vmul.f32 %v245, %v308
    %v324 = vmul.f32 %v248, %v310
    %v325 = vmul.f32 %v253, %v312
    %v326 = vmul.f32 %v256, %v314
    %v327 = vmul.f32 %v261, %v316
    %v328 = vmul.f32 %v264, %v318
    %v329 = vmul.f32 %v269, %v320
    %v330 = vmul.f32 %v272, %v322
    %v331 = vpack.c.bf16 %v324, %v323
    %v332 = vpack.c.bf16 %v326, %v325
    %v333 = vpack.c.bf16 %v328, %v327
    %v334 = vpack.c.bf16 %v330, %v329
    %v335 = vld [vmem:[#allocation3] sm:$0xf]
    %v336 = vld [vmem:[#allocation3 + $0x4] sm:$0xf]
    %v337 = vld [vmem:[#allocation3 + $0x8] sm:$0xf]
    %v338 = vld [vmem:[#allocation3 + $0xc] sm:$0xf]
    %v339 = vld [vmem:[#allocation3 + $0x10] sm:$0xf]
    %v340 = vld [vmem:[#allocation3 + $0x14] sm:$0xf]
    %v341 = vld [vmem:[#allocation3 + $0x18] sm:$0xf]
    %v342 = vld [vmem:[#allocation3 + $0x1c] sm:$0xf]
    %v343 = vld [vmem:[%s4] sm:$0x1]
    %v345 = vlaneseq
    %v346 = vshrl.u32 %v345, 7
    %v347 = vsub.s32 0, %v346
    %v348 = vrot.slane %v343, %v347
    %354 = vrot.lane.b32.xlu0 %v331, 64
    %v355 = vpop.permute.xlu0 %354
    %356 = vrot.lane.b32.xlu0 %v332, 64
    %v357 = vpop.permute.xlu0 %356
    %358 = vrot.lane.b32.xlu0 %v333, 64
    %v359 = vpop.permute.xlu0 %358
    %360 = vrot.lane.b32.xlu0 %v334, 64
    %v361 = vpop.permute.xlu0 %360
    %v370 = vunpack.c.l.b16 %v335
    %v371 = vunpack.c.l.b16 %v336
    %v372 = vunpack.c.l.b16 %v337
    %v373 = vunpack.c.l.b16 %v338
    %v374 = vunpack.c.l.b16 %v339
    %v375 = vunpack.c.l.b16 %v340
    %v376 = vunpack.c.l.b16 %v341
    %v377 = vunpack.c.l.b16 %v342
    %v378 = vpack.c.b16 %v371, %v370
    %v379 = vpack.c.b16 %v373, %v372
    %v380 = vpack.c.b16 %v375, %v374
    %v381 = vpack.c.b16 %v377, %v376
    %vm386 = vcmask 523264
    %v388 = vsel %vm386, %v355, 0
    %v391 = vsel %vm386, %v357, 0
    %v394 = vsel %vm386, %v359, 0
    %v397 = vsel %vm386, %v361, 0
    %399 = vmatprep.subr.bf16.mxu0 0
    %400 = vmatpush1.bf16.msra.mxu0 0
    %401 = vmatprep.subr.bf16.mxu0 0
    %402 = vmatpush1.bf16.msra.mxu0 0
    %403 = vmatprep.subr.bf16.mxu0 0
    %404 = vmatpush1.bf16.msra.mxu0 0
    %405 = vmatprep.subr.bf16.mxu0 0
    %406 = vmatpush1.bf16.msra.mxu0 0
    %407 = vmatprep.subr.bf16.mxu0 0
    %408 = vmatpush1.bf16.msra.mxu0 %v381
    %409 = vmatprep.subr.bf16.mxu0 0
    %410 = vmatpush1.bf16.msra.mxu0 %v380
    %411 = vmatprep.subr.bf16.mxu0 0
    %412 = vmatpush1.bf16.msra.mxu0 %v379
    %413 = vmatprep.subr.bf16.mxu0 0
    %414 = vmatpush1.bf16.msra.mxu0 %v378
    %415 = vmatprep.subr.bf16.mxu0 0
    %416 = vmatpush2.bf16.msra.mxu0 0
    %417 = vmatprep.subr.bf16.mxu0 0
    %418 = vmatpush2.bf16.msra.mxu0 0
    %419 = vmatprep.subr.bf16.mxu0 0
    %420 = vmatpush2.bf16.msra.mxu0 0
    %421 = vmatprep.subr.bf16.mxu0 0
    %422 = vmatpush2.bf16.msra.mxu0 0
    %423 = vmatprep.subr.bf16.mxu0 0
    %424 = vmatpush2.bf16.msra.mxu0 0
    %425 = vmatprep.subr.bf16.mxu0 0
    %426 = vmatpush2.bf16.msra.mxu0 0
    %427 = vmatprep.subr.bf16.mxu0 0
    %428 = vmatpush2.bf16.msra.mxu0 0
    %429 = vmatprep.subr.bf16.mxu0 0
    %430 = vmatpush2.bf16.msra.mxu0 0
    %431 = vmatprep.mubr.bf16.mxu0 0
    %432 = vmatmul.mubr.bf16.gmra.mxu0 %v388
    %v433 = vpop.f32.mrf.mxu0
    %v434 = vadd.f32 %v348, %v433
    %v435 = vpop.f32.mrf.mxu0
    %v436 = vpop.f32.mrf.mxu0
    %v437 = vadd.f32 %v348, %v436
    %v438 = vpop.f32.mrf.mxu0
    %439 = vmatprep.mubr.bf16.mxu0 0
    %440 = vmatmul.mubr.bf16.gmra.mxu0 %v391
    %v441 = vpop.f32.mrf.mxu0
    %v442 = vadd.f32 %v348, %v441
    %v443 = vpop.f32.mrf.mxu0
    %v444 = vpop.f32.mrf.mxu0
    %v445 = vadd.f32 %v348, %v444
    %v446 = vpop.f32.mrf.mxu0
    %447 = vmatprep.mubr.bf16.mxu0 0
    %448 = vmatmul.mubr.bf16.gmra.mxu0 %v394
    %v449 = vpop.f32.mrf.mxu0
    %v450 = vadd.f32 %v348, %v449
    %v451 = vpop.f32.mrf.mxu0
    %v452 = vpop.f32.mrf.mxu0
    %v453 = vadd.f32 %v348, %v452
    %v454 = vpop.f32.mrf.mxu0
    %455 = vmatprep.mubr.bf16.mxu0 0
    %456 = vmatmul.mubr.bf16.gmra.mxu0 %v397
    %v457 = vpop.f32.mrf.mxu0
    %v458 = vadd.f32 %v348, %v457
    %v459 = vpop.f32.mrf.mxu0
    %v460 = vpop.f32.mrf.mxu0
    %v461 = vadd.f32 %v348, %v460
    %v462 = vpop.f32.mrf.mxu0
    %463 = vdwg.mxu0
    %v464 = vpack.c.bf16 %v437, %v434
    %466 = vrot.lane.b32.xlu0 %v464, 96
    %v467 = vpop.permute.xlu0 %466
    %vm468 = vcmask 261120
    %v470 = vsel %vm468, %v464, 0
    %v473 = vsel %vm468, %v467, 0
    %475 = vmatprep.subr.bf16.mxu0 0
    %476 = vmatpush1.bf16.xpose.msra.mxu0 0
    %477 = vmatprep.subr.bf16.mxu0 0
    %478 = vmatpush1.bf16.xpose.msra.mxu0 0
    %479 = vmatprep.subr.bf16.mxu0 0
    %480 = vmatpush1.bf16.xpose.msra.mxu0 0
    %481 = vmatprep.subr.bf16.mxu0 0
    %482 = vmatpush1.bf16.xpose.msra.mxu0 0
    %483 = vmatprep.subr.bf16.mxu0 0
    %484 = vmatpush1.bf16.xpose.msra.mxu0 0
    %485 = vmatprep.subr.bf16.mxu0 0
    %486 = vmatpush1.bf16.xpose.msra.mxu0 0
    %487 = vmatprep.subr.bf16.mxu0 0
    %488 = vmatpush1.bf16.xpose.msra.mxu0 0
    %489 = vmatprep.subr.bf16.mxu0 0
    %490 = vmatpush1.bf16.xpose.msra.mxu0 %v473
    %491 = vmatprep.subr.bf16.mxu0 0
    %492 = vmatpush2.bf16.xpose.msra.mxu0 0
    %493 = vmatprep.subr.bf16.mxu0 0
    %494 = vmatpush2.bf16.xpose.msra.mxu0 0
    %495 = vmatprep.subr.bf16.mxu0 0
    %496 = vmatpush2.bf16.xpose.msra.mxu0 0
    %497 = vmatprep.subr.bf16.mxu0 0
    %498 = vmatpush2.bf16.xpose.msra.mxu0 0
    %499 = vmatprep.subr.bf16.mxu0 0
    %500 = vmatpush2.bf16.xpose.msra.mxu0 0
    %501 = vmatprep.subr.bf16.mxu0 0
    %502 = vmatpush2.bf16.xpose.msra.mxu0 0
    %503 = vmatprep.subr.bf16.mxu0 0
    %504 = vmatpush2.bf16.xpose.msra.mxu0 0
    %505 = vmatprep.subr.bf16.mxu0 0
    %506 = vmatpush2.bf16.xpose.msra.mxu0 0
    %507 = vmatprep.mubr.bf16.mxu0 0
    %508 = vmatmul.mubr.bf16.gmra.mxu0 %v470
    %v509 = vpop.f32.mrf.mxu0
    %v510 = vadd.f32 0.0, %v509
    %v511 = vpop.f32.mrf.mxu0
    %v512 = vpop.f32.mrf.mxu0
    %v513 = vadd.f32 0.0, %v512
    %v514 = vpop.f32.mrf.mxu0
    %515 = vdwg.mxu0
    %vm516 = vcmask 130048
    %v517 = vsel %vm516, %v510, -inf
    %518 = vmax.xlane.f32.xlu0 %v517
    %v519 = vpop.xlane.xlu0 %518
    %v520 = vsel %vm516, %v513, -inf
    %521 = vmax.xlane.f32.xlu0 %v520
    %v522 = vpop.xlane.xlu0 %521
    %v523 = vsub.f32 %v510, %v519
    %v524 = vsub.f32 %v513, %v522
    %v525 = vmul.f32 %v523, 1.442695
    %v526 = vpow.pop %v525
    %v527 = vmul.f32 %v524, 1.442695
    %v528 = vpow.pop %v527
    %v529 = vsel %vm516, %v526, 0.0
    %530 = vadd.xlane.f32.xlu0 %v529
    %v531 = vpop.xlane.xlu0 %530
    %v532 = vsel %vm516, %v528, 0.0
    %533 = vadd.xlane.f32.xlu0 %v532
    %v534 = vpop.xlane.xlu0 %533
    %v535 = vrcp.pop %v531
    %v536 = vrcp.pop %v534
    %v537 = vmul.f32 %v526, %v535
    %v538 = vmul.f32 %v528, %v536
    %v539 = vpack.c.bf16 %v538, %v537
    %540 = vrot.lane.b32.xlu0 %v464, 64
    %v541 = vpop.permute.xlu0 %540
    %v544 = vsel %vm516, %v539, 0
    %546 = vmatprep.subr.bf16.mxu0 0
    %547 = vmatpush1.bf16.msra.mxu0 0
    %548 = vmatprep.subr.bf16.mxu0 0
    %549 = vmatpush1.bf16.msra.mxu0 0
    %550 = vmatprep.subr.bf16.mxu0 0
    %551 = vmatpush1.bf16.msra.mxu0 0
    %552 = vmatprep.subr.bf16.mxu0 0
    %553 = vmatpush1.bf16.msra.mxu0 0
    %554 = vmatprep.subr.bf16.mxu0 0
    %555 = vmatpush1.bf16.msra.mxu0 0
    %556 = vmatprep.subr.bf16.mxu0 0
    %557 = vmatpush1.bf16.msra.mxu0 0
    %558 = vmatprep.subr.bf16.mxu0 0
    %559 = vmatpush1.bf16.msra.mxu0 0
    %560 = vmatprep.subr.bf16.mxu0 0
    %561 = vmatpush1.bf16.msra.mxu0 %v541
    %562 = vmatprep.subr.bf16.mxu0 0
    %563 = vmatpush2.bf16.msra.mxu0 0
    %564 = vmatprep.subr.bf16.mxu0 0
    %565 = vmatpush2.bf16.msra.mxu0 0
    %566 = vmatprep.subr.bf16.mxu0 0
    %567 = vmatpush2.bf16.msra.mxu0 0
    %568 = vmatprep.subr.bf16.mxu0 0
    %569 = vmatpush2.bf16.msra.mxu0 0
    %570 = vmatprep.subr.bf16.mxu0 0
    %571 = vmatpush2.bf16.msra.mxu0 0
    %572 = vmatprep.subr.bf16.mxu0 0
    %573 = vmatpush2.bf16.msra.mxu0 0
    %574 = vmatprep.subr.bf16.mxu0 0
    %575 = vmatpush2.bf16.msra.mxu0 0
    %576 = vmatprep.subr.bf16.mxu0 0
    %577 = vmatpush2.bf16.msra.mxu0 0
    %578 = vmatprep.mubr.bf16.mxu0 0
    %579 = vmatmul.mubr.bf16.gmra.mxu0 %v544
    %v580 = vpop.f32.mrf.mxu0
    %v581 = vadd.f32 0.0, %v580
    %v582 = vpop.f32.mrf.mxu0
    %v583 = vpop.f32.mrf.mxu0
    %v584 = vadd.f32 0.0, %v583
    %v585 = vpop.f32.mrf.mxu0
    %586 = vdwg.mxu0
    %587 = vst.msk [vmem:[#allocation2] sm:$0xff] %vm386, %v581
    %588 = vst.msk [vmem:[#allocation2 + $0x8] sm:$0xff] %vm386, %v584
    %v589 = vpack.c.bf16 %v445, %v442
    %591 = vrot.lane.b32.xlu0 %v589, 96
    %v592 = vpop.permute.xlu0 %591
    %v594 = vsel %vm468, %v589, 0
    %v597 = vsel %vm468, %v592, 0
    %599 = vmatprep.subr.bf16.mxu0 0
    %600 = vmatpush1.bf16.xpose.msra.mxu0 0
    %601 = vmatprep.subr.bf16.mxu0 0
    %602 = vmatpush1.bf16.xpose.msra.mxu0 0
    %603 = vmatprep.subr.bf16.mxu0 0
    %604 = vmatpush1.bf16.xpose.msra.mxu0 0
    %605 = vmatprep.subr.bf16.mxu0 0
    %606 = vmatpush1.bf16.xpose.msra.mxu0 0
    %607 = vmatprep.subr.bf16.mxu0 0
    %608 = vmatpush1.bf16.xpose.msra.mxu0 0
    %609 = vmatprep.subr.bf16.mxu0 0
    %610 = vmatpush1.bf16.xpose.msra.mxu0 0
    %611 = vmatprep.subr.bf16.mxu0 0
    %612 = vmatpush1.bf16.xpose.msra.mxu0 0
    %613 = vmatprep.subr.bf16.mxu0 0
    %614 = vmatpush1.bf16.xpose.msra.mxu0 %v597
    %615 = vmatprep.subr.bf16.mxu0 0
    %616 = vmatpush2.bf16.xpose.msra.mxu0 0
    %617 = vmatprep.subr.bf16.mxu0 0
    %618 = vmatpush2.bf16.xpose.msra.mxu0 0
    %619 = vmatprep.subr.bf16.mxu0 0
    %620 = vmatpush2.bf16.xpose.msra.mxu0 0
    %621 = vmatprep.subr.bf16.mxu0 0
    %622 = vmatpush2.bf16.xpose.msra.mxu0 0
    %623 = vmatprep.subr.bf16.mxu0 0
    %624 = vmatpush2.bf16.xpose.msra.mxu0 0
    %625 = vmatprep.subr.bf16.mxu0 0
    %626 = vmatpush2.bf16.xpose.msra.mxu0 0
    %627 = vmatprep.subr.bf16.mxu0 0
    %628 = vmatpush2.bf16.xpose.msra.mxu0 0
    %629 = vmatprep.subr.bf16.mxu0 0
    %630 = vmatpush2.bf16.xpose.msra.mxu0 0
    %631 = vmatprep.mubr.bf16.mxu0 0
    %632 = vmatmul.mubr.bf16.gmra.mxu0 %v594
    %v633 = vpop.f32.mrf.mxu0
    %v634 = vadd.f32 0.0, %v633
    %v635 = vpop.f32.mrf.mxu0
    %v636 = vpop.f32.mrf.mxu0
    %v637 = vadd.f32 0.0, %v636
    %v638 = vpop.f32.mrf.mxu0
    %639 = vdwg.mxu0
    %v640 = vsel %vm516, %v634, -inf
    %641 = vmax.xlane.f32.xlu0 %v640
    %v642 = vpop.xlane.xlu0 %641
    %v643 = vsel %vm516, %v637, -inf
    %644 = vmax.xlane.f32.xlu0 %v643
    %v645 = vpop.xlane.xlu0 %644
    %v646 = vsub.f32 %v634, %v642
    %v647 = vsub.f32 %v637, %v645
    %v648 = vmul.f32 %v646, 1.442695
    %v649 = vpow.pop %v648
    %v650 = vmul.f32 %v647, 1.442695
    %v651 = vpow.pop %v650
    %v652 = vsel %vm516, %v649, 0.0
    %653 = vadd.xlane.f32.xlu0 %v652
    %v654 = vpop.xlane.xlu0 %653
    %v655 = vsel %vm516, %v651, 0.0
    %656 = vadd.xlane.f32.xlu0 %v655
    %v657 = vpop.xlane.xlu0 %656
    %v658 = vrcp.pop %v654
    %v659 = vrcp.pop %v657
    %v660 = vmul.f32 %v649, %v658
    %v661 = vmul.f32 %v651, %v659
    %v662 = vpack.c.bf16 %v661, %v660
    %663 = vrot.lane.b32.xlu0 %v589, 64
    %v664 = vpop.permute.xlu0 %663
    %v667 = vsel %vm516, %v662, 0
    %669 = vmatprep.subr.bf16.mxu0 0
    %670 = vmatpush1.bf16.msra.mxu0 0
    %671 = vmatprep.subr.bf16.mxu0 0
    %672 = vmatpush1.bf16.msra.mxu0 0
    %673 = vmatprep.subr.bf16.mxu0 0
    %674 = vmatpush1.bf16.msra.mxu0 0
    %675 = vmatprep.subr.bf16.mxu0 0
    %676 = vmatpush1.bf16.msra.mxu0 0
    %677 = vmatprep.subr.bf16.mxu0 0
    %678 = vmatpush1.bf16.msra.mxu0 0
    %679 = vmatprep.subr.bf16.mxu0 0
    %680 = vmatpush1.bf16.msra.mxu0 0
    %681 = vmatprep.subr.bf16.mxu0 0
    %682 = vmatpush1.bf16.msra.mxu0 0
    %683 = vmatprep.subr.bf16.mxu0 0
    %684 = vmatpush1.bf16.msra.mxu0 %v664
    %685 = vmatprep.subr.bf16.mxu0 0
    %686 = vmatpush2.bf16.msra.mxu0 0
    %687 = vmatprep.subr.bf16.mxu0 0
    %688 = vmatpush2.bf16.msra.mxu0 0
    %689 = vmatprep.subr.bf16.mxu0 0
    %690 = vmatpush2.bf16.msra.mxu0 0
    %691 = vmatprep.subr.bf16.mxu0 0
    %692 = vmatpush2.bf16.msra.mxu0 0
    %693 = vmatprep.subr.bf16.mxu0 0
    %694 = vmatpush2.bf16.msra.mxu0 0
    %695 = vmatprep.subr.bf16.mxu0 0
    %696 = vmatpush2.bf16.msra.mxu0 0
    %697 = vmatprep.subr.bf16.mxu0 0
    %698 = vmatpush2.bf16.msra.mxu0 0
    %699 = vmatprep.subr.bf16.mxu0 0
    %700 = vmatpush2.bf16.msra.mxu0 0
    %701 = vmatprep.mubr.bf16.mxu0 0
    %702 = vmatmul.mubr.bf16.gmra.mxu0 %v667
    %v703 = vpop.f32.mrf.mxu0
    %v704 = vadd.f32 0.0, %v703
    %v705 = vpop.f32.mrf.mxu0
    %v706 = vpop.f32.mrf.mxu0
    %v707 = vadd.f32 0.0, %v706
    %v708 = vpop.f32.mrf.mxu0
    %709 = vdwg.mxu0
    %710 = vst.msk [vmem:[#allocation2 + $0x10] sm:$0xff] %vm386, %v704
    %711 = vst.msk [vmem:[#allocation2 + $0x18] sm:$0xff] %vm386, %v707
    %v712 = vpack.c.bf16 %v453, %v450
    %714 = vrot.lane.b32.xlu0 %v712, 96
    %v715 = vpop.permute.xlu0 %714
    %v717 = vsel %vm468, %v712, 0
    %v720 = vsel %vm468, %v715, 0
    %722 = vmatprep.subr.bf16.mxu0 0
    %723 = vmatpush1.bf16.xpose.msra.mxu0 0
    %724 = vmatprep.subr.bf16.mxu0 0
    %725 = vmatpush1.bf16.xpose.msra.mxu0 0
    %726 = vmatprep.subr.bf16.mxu0 0
    %727 = vmatpush1.bf16.xpose.msra.mxu0 0
    %728 = vmatprep.subr.bf16.mxu0 0
    %729 = vmatpush1.bf16.xpose.msra.mxu0 0
    %730 = vmatprep.subr.bf16.mxu0 0
    %731 = vmatpush1.bf16.xpose.msra.mxu0 0
    %732 = vmatprep.subr.bf16.mxu0 0
    %733 = vmatpush1.bf16.xpose.msra.mxu0 0
    %734 = vmatprep.subr.bf16.mxu0 0
    %735 = vmatpush1.bf16.xpose.msra.mxu0 0
    %736 = vmatprep.subr.bf16.mxu0 0
    %737 = vmatpush1.bf16.xpose.msra.mxu0 %v720
    %738 = vmatprep.subr.bf16.mxu0 0
    %739 = vmatpush2.bf16.xpose.msra.mxu0 0
    %740 = vmatprep.subr.bf16.mxu0 0
    %741 = vmatpush2.bf16.xpose.msra.mxu0 0
    %742 = vmatprep.subr.bf16.mxu0 0
    %743 = vmatpush2.bf16.xpose.msra.mxu0 0
    %744 = vmatprep.subr.bf16.mxu0 0
    %745 = vmatpush2.bf16.xpose.msra.mxu0 0
    %746 = vmatprep.subr.bf16.mxu0 0
    %747 = vmatpush2.bf16.xpose.msra.mxu0 0
    %748 = vmatprep.subr.bf16.mxu0 0
    %749 = vmatpush2.bf16.xpose.msra.mxu0 0
    %750 = vmatprep.subr.bf16.mxu0 0
    %751 = vmatpush2.bf16.xpose.msra.mxu0 0
    %752 = vmatprep.subr.bf16.mxu0 0
    %753 = vmatpush2.bf16.xpose.msra.mxu0 0
    %754 = vmatprep.mubr.bf16.mxu0 0
    %755 = vmatmul.mubr.bf16.gmra.mxu0 %v717
    %v756 = vpop.f32.mrf.mxu0
    %v757 = vadd.f32 0.0, %v756
    %v758 = vpop.f32.mrf.mxu0
    %v759 = vpop.f32.mrf.mxu0
    %v760 = vadd.f32 0.0, %v759
    %v761 = vpop.f32.mrf.mxu0
    %762 = vdwg.mxu0
    %v763 = vsel %vm516, %v757, -inf
    %764 = vmax.xlane.f32.xlu0 %v763
    %v765 = vpop.xlane.xlu0 %764
    %v766 = vsel %vm516, %v760, -inf
    %767 = vmax.xlane.f32.xlu0 %v766
    %v768 = vpop.xlane.xlu0 %767
    %v769 = vsub.f32 %v757, %v765
    %v770 = vsub.f32 %v760, %v768
    %v771 = vmul.f32 %v769, 1.442695
    %v772 = vpow.pop %v771
    %v773 = vmul.f32 %v770, 1.442695
    %v774 = vpow.pop %v773
    %v775 = vsel %vm516, %v772, 0.0
    %776 = vadd.xlane.f32.xlu0 %v775
    %v777 = vpop.xlane.xlu0 %776
    %v778 = vsel %vm516, %v774, 0.0
    %779 = vadd.xlane.f32.xlu0 %v778
    %v780 = vpop.xlane.xlu0 %779
    %v781 = vrcp.pop %v777
    %v782 = vrcp.pop %v780
    %v783 = vmul.f32 %v772, %v781
    %v784 = vmul.f32 %v774, %v782
    %v785 = vpack.c.bf16 %v784, %v783
    %786 = vrot.lane.b32.xlu0 %v712, 64
    %v787 = vpop.permute.xlu0 %786
    %v790 = vsel %vm516, %v785, 0
    %792 = vmatprep.subr.bf16.mxu0 0
    %793 = vmatpush1.bf16.msra.mxu0 0
    %794 = vmatprep.subr.bf16.mxu0 0
    %795 = vmatpush1.bf16.msra.mxu0 0
    %796 = vmatprep.subr.bf16.mxu0 0
    %797 = vmatpush1.bf16.msra.mxu0 0
    %798 = vmatprep.subr.bf16.mxu0 0
    %799 = vmatpush1.bf16.msra.mxu0 0
    %800 = vmatprep.subr.bf16.mxu0 0
    %801 = vmatpush1.bf16.msra.mxu0 0
    %802 = vmatprep.subr.bf16.mxu0 0
    %803 = vmatpush1.bf16.msra.mxu0 0
    %804 = vmatprep.subr.bf16.mxu0 0
    %805 = vmatpush1.bf16.msra.mxu0 0
    %806 = vmatprep.subr.bf16.mxu0 0
    %807 = vmatpush1.bf16.msra.mxu0 %v787
    %808 = vmatprep.subr.bf16.mxu0 0
    %809 = vmatpush2.bf16.msra.mxu0 0
    %810 = vmatprep.subr.bf16.mxu0 0
    %811 = vmatpush2.bf16.msra.mxu0 0
    %812 = vmatprep.subr.bf16.mxu0 0
    %813 = vmatpush2.bf16.msra.mxu0 0
    %814 = vmatprep.subr.bf16.mxu0 0
    %815 = vmatpush2.bf16.msra.mxu0 0
    %816 = vmatprep.subr.bf16.mxu0 0
    %817 = vmatpush2.bf16.msra.mxu0 0
    %818 = vmatprep.subr.bf16.mxu0 0
    %819 = vmatpush2.bf16.msra.mxu0 0
    %820 = vmatprep.subr.bf16.mxu0 0
    %821 = vmatpush2.bf16.msra.mxu0 0
    %822 = vmatprep.subr.bf16.mxu0 0
    %823 = vmatpush2.bf16.msra.mxu0 0
    %824 = vmatprep.mubr.bf16.mxu0 0
    %825 = vmatmul.mubr.bf16.gmra.mxu0 %v790
    %v826 = vpop.f32.mrf.mxu0
    %v827 = vadd.f32 0.0, %v826
    %v828 = vpop.f32.mrf.mxu0
    %v829 = vpop.f32.mrf.mxu0
    %v830 = vadd.f32 0.0, %v829
    %v831 = vpop.f32.mrf.mxu0
    %832 = vdwg.mxu0
    %833 = vst.msk [vmem:[#allocation2 + $0x20] sm:$0xff] %vm386, %v827
    %834 = vst.msk [vmem:[#allocation2 + $0x28] sm:$0xff] %vm386, %v830
    %v835 = vpack.c.bf16 %v461, %v458
    %837 = vrot.lane.b32.xlu0 %v835, 96
    %v838 = vpop.permute.xlu0 %837
    %v840 = vsel %vm468, %v835, 0
    %v843 = vsel %vm468, %v838, 0
    %845 = vmatprep.subr.bf16.mxu0 0
    %846 = vmatpush1.bf16.xpose.msra.mxu0 0
    %847 = vmatprep.subr.bf16.mxu0 0
    %848 = vmatpush1.bf16.xpose.msra.mxu0 0
    %849 = vmatprep.subr.bf16.mxu0 0
    %850 = vmatpush1.bf16.xpose.msra.mxu0 0
    %851 = vmatprep.subr.bf16.mxu0 0
    %852 = vmatpush1.bf16.xpose.msra.mxu0 0
    %853 = vmatprep.subr.bf16.mxu0 0
    %854 = vmatpush1.bf16.xpose.msra.mxu0 0
    %855 = vmatprep.subr.bf16.mxu0 0
    %856 = vmatpush1.bf16.xpose.msra.mxu0 0
    %857 = vmatprep.subr.bf16.mxu0 0
    %858 = vmatpush1.bf16.xpose.msra.mxu0 0
    %859 = vmatprep.subr.bf16.mxu0 0
    %860 = vmatpush1.bf16.xpose.msra.mxu0 %v843
    %861 = vmatprep.subr.bf16.mxu0 0
    %862 = vmatpush2.bf16.xpose.msra.mxu0 0
    %863 = vmatprep.subr.bf16.mxu0 0
    %864 = vmatpush2.bf16.xpose.msra.mxu0 0
    %865 = vmatprep.subr.bf16.mxu0 0
    %866 = vmatpush2.bf16.xpose.msra.mxu0 0
    %867 = vmatprep.subr.bf16.mxu0 0
    %868 = vmatpush2.bf16.xpose.msra.mxu0 0
    %869 = vmatprep.subr.bf16.mxu0 0
    %870 = vmatpush2.bf16.xpose.msra.mxu0 0
    %871 = vmatprep.subr.bf16.mxu0 0
    %872 = vmatpush2.bf16.xpose.msra.mxu0 0
    %873 = vmatprep.subr.bf16.mxu0 0
    %874 = vmatpush2.bf16.xpose.msra.mxu0 0
    %875 = vmatprep.subr.bf16.mxu0 0
    %876 = vmatpush2.bf16.xpose.msra.mxu0 0
    %877 = vmatprep.mubr.bf16.mxu0 0
    %878 = vmatmul.mubr.bf16.gmra.mxu0 %v840
    %v879 = vpop.f32.mrf.mxu0
    %v880 = vadd.f32 0.0, %v879
    %v881 = vpop.f32.mrf.mxu0
    %v882 = vpop.f32.mrf.mxu0
    %v883 = vadd.f32 0.0, %v882
    %v884 = vpop.f32.mrf.mxu0
    %885 = vdwg.mxu0
    %v886 = vsel %vm516, %v880, -inf
    %887 = vmax.xlane.f32.xlu0 %v886
    %v888 = vpop.xlane.xlu0 %887
    %v889 = vsel %vm516, %v883, -inf
    %890 = vmax.xlane.f32.xlu0 %v889
    %v891 = vpop.xlane.xlu0 %890
    %v892 = vsub.f32 %v880, %v888
    %v893 = vsub.f32 %v883, %v891
    %v894 = vmul.f32 %v892, 1.442695
    %v895 = vpow.pop %v894
    %v896 = vmul.f32 %v893, 1.442695
    %v897 = vpow.pop %v896
    %v898 = vsel %vm516, %v895, 0.0
    %899 = vadd.xlane.f32.xlu0 %v898
    %v900 = vpop.xlane.xlu0 %899
    %v901 = vsel %vm516, %v897, 0.0
    %902 = vadd.xlane.f32.xlu0 %v901
    %v903 = vpop.xlane.xlu0 %902
    %v904 = vrcp.pop %v900
    %v905 = vrcp.pop %v903
    %v906 = vmul.f32 %v895, %v904
    %v907 = vmul.f32 %v897, %v905
    %v908 = vpack.c.bf16 %v907, %v906
    %909 = vrot.lane.b32.xlu0 %v835, 64
    %v910 = vpop.permute.xlu0 %909
    %v913 = vsel %vm516, %v908, 0
    %915 = vmatprep.subr.bf16.mxu0 0
    %916 = vmatpush1.bf16.msra.mxu0 0
    %917 = vmatprep.subr.bf16.mxu0 0
    %918 = vmatpush1.bf16.msra.mxu0 0
    %919 = vmatprep.subr.bf16.mxu0 0
    %920 = vmatpush1.bf16.msra.mxu0 0
    %921 = vmatprep.subr.bf16.mxu0 0
    %922 = vmatpush1.bf16.msra.mxu0 0
    %923 = vmatprep.subr.bf16.mxu0 0
    %924 = vmatpush1.bf16.msra.mxu0 0
    %925 = vmatprep.subr.bf16.mxu0 0
    %926 = vmatpush1.bf16.msra.mxu0 0
    %927 = vmatprep.subr.bf16.mxu0 0
    %928 = vmatpush1.bf16.msra.mxu0 0
    %929 = vmatprep.subr.bf16.mxu0 0
    %930 = vmatpush1.bf16.msra.mxu0 %v910
    %931 = vmatprep.subr.bf16.mxu0 0
    %932 = vmatpush2.bf16.msra.mxu0 0
    %933 = vmatprep.subr.bf16.mxu0 0
    %934 = vmatpush2.bf16.msra.mxu0 0
    %935 = vmatprep.subr.bf16.mxu0 0
    %936 = vmatpush2.bf16.msra.mxu0 0
    %937 = vmatprep.subr.bf16.mxu0 0
    %938 = vmatpush2.bf16.msra.mxu0 0
    %939 = vmatprep.subr.bf16.mxu0 0
    %940 = vmatpush2.bf16.msra.mxu0 0
    %941 = vmatprep.subr.bf16.mxu0 0
    %942 = vmatpush2.bf16.msra.mxu0 0
    %943 = vmatprep.subr.bf16.mxu0 0
    %944 = vmatpush2.bf16.msra.mxu0 0
    %945 = vmatprep.subr.bf16.mxu0 0
    %946 = vmatpush2.bf16.msra.mxu0 0
    %947 = vmatprep.mubr.bf16.mxu0 0
    %948 = vmatmul.mubr.bf16.gmra.mxu0 %v913
    %v949 = vpop.f32.mrf.mxu0
    %v950 = vadd.f32 0.0, %v949
    %v951 = vpop.f32.mrf.mxu0
    %v952 = vpop.f32.mrf.mxu0
    %v953 = vadd.f32 0.0, %v952
    %v954 = vpop.f32.mrf.mxu0
    %955 = vdwg.mxu0
    %956 = vst.msk [vmem:[#allocation2 + $0x30] sm:$0xff] %vm386, %v950
    %957 = vst.msk [vmem:[#allocation2 + $0x38] sm:$0xff] %vm386, %v953
    %v958 = vld [vmem:[#allocation2] sm:$0xff]
    %v959 = vld [vmem:[#allocation2 + $0x8] sm:$0xff]
    %v960 = vld [vmem:[#allocation2 + $0x10] sm:$0xff]
    %v961 = vld [vmem:[#allocation2 + $0x18] sm:$0xff]
    %v962 = vld [vmem:[#allocation2 + $0x20] sm:$0xff]
    %v963 = vld [vmem:[#allocation2 + $0x28] sm:$0xff]
    %v964 = vld [vmem:[#allocation2 + $0x30] sm:$0xff]
    %v965 = vld [vmem:[#allocation2 + $0x38] sm:$0xff]
    %v966 = vlaneseq
    %v967 = vshrl.u32 %v966, 7
    %v968 = vadd.s32 %v967, 8
    %v969 = vadd.s32 %v967, 16
    %v970 = vadd.s32 %v967, 24
    %v971 = vadd.s32 %v967, 32
    %v972 = vadd.s32 %v967, 40
    %v973 = vadd.s32 %v967, 48
    %v974 = vadd.s32 %v967, 56
    %vm975 = vcmp.lt.s32.totalorder %v967, 0
    %v976 = vsub.s32 0, %v967
    %v977 = vsel %vm975, %v976, %v967
    %v978 = vshrl.u32 %v977, 4
    %v979 = vand.u32 %v977, 15
    %v980 = vsub.s32 0, %v979
    %v981 = vsel %vm975, %v980, %v979
    %vm982 = vcmp.lt.s32.totalorder %v968, 0
    %v983 = vsub.s32 0, %v968
    %v984 = vsel %vm982, %v983, %v968
    %v985 = vshrl.u32 %v984, 4
    %v986 = vand.u32 %v984, 15
    %v987 = vsub.s32 0, %v986
    %v988 = vsel %vm982, %v987, %v986
    %vm989 = vcmp.lt.s32.totalorder %v969, 0
    %v990 = vsub.s32 0, %v969
    %v991 = vsel %vm989, %v990, %v969
    %v992 = vshrl.u32 %v991, 4
    %v993 = vand.u32 %v991, 15
    %v994 = vsub.s32 0, %v993
    %v995 = vsel %vm989, %v994, %v993
    %vm996 = vcmp.lt.s32.totalorder %v970, 0
    %v997 = vsub.s32 0, %v970
    %v998 = vsel %vm996, %v997, %v970
    %v999 = vshrl.u32 %v998, 4
    %v1000 = vand.u32 %v998, 15
    %v1001 = vsub.s32 0, %v1000
    %v1002 = vsel %vm996, %v1001, %v1000
    %vm1003 = vcmp.lt.s32.totalorder %v971, 0
    %v1004 = vsub.s32 0, %v971
    %v1005 = vsel %vm1003, %v1004, %v971
    %v1006 = vshrl.u32 %v1005, 4
    %v1007 = vand.u32 %v1005, 15
    %v1008 = vsub.s32 0, %v1007
    %v1009 = vsel %vm1003, %v1008, %v1007
    %vm1010 = vcmp.lt.s32.totalorder %v972, 0
    %v1011 = vsub.s32 0, %v972
    %v1012 = vsel %vm1010, %v1011, %v972
    %v1013 = vshrl.u32 %v1012, 4
    %v1014 = vand.u32 %v1012, 15
    %v1015 = vsub.s32 0, %v1014
    %v1016 = vsel %vm1010, %v1015, %v1014
    %vm1017 = vcmp.lt.s32.totalorder %v973, 0
    %v1018 = vsub.s32 0, %v973
    %v1019 = vsel %vm1017, %v1018, %v973
    %v1020 = vshrl.u32 %v1019, 4
    %v1021 = vand.u32 %v1019, 15
    %v1022 = vsub.s32 0, %v1021
    %v1023 = vsel %vm1017, %v1022, %v1021
    %vm1024 = vcmp.lt.s32.totalorder %v974, 0
    %v1025 = vsub.s32 0, %v974
    %v1026 = vsel %vm1024, %v1025, %v974
    %v1027 = vshrl.u32 %v1026, 4
    %v1028 = vand.u32 %v1026, 15
    %v1029 = vsub.s32 0, %v1028
    %v1030 = vsel %vm1024, %v1029, %v1028
    %vm1031 = vcmp.ne.s32.totalorder %v981, 0
    %vm1032 = vcmp.ne.s32.totalorder %v988, 0
    %vm1033 = vcmp.ne.s32.totalorder %v995, 0
    %vm1034 = vcmp.ne.s32.totalorder %v1002, 0
    %vm1035 = vcmp.ne.s32.totalorder %v1009, 0
    %vm1036 = vcmp.ne.s32.totalorder %v1016, 0
    %vm1037 = vcmp.ne.s32.totalorder %v1023, 0
    %vm1038 = vcmp.ne.s32.totalorder %v1030, 0
    %vm1039 = vcmp.lt.s32.totalorder %v981, 0
    %vm1040 = vcmp.lt.s32.totalorder %v988, 0
    %vm1041 = vcmp.lt.s32.totalorder %v995, 0
    %vm1042 = vcmp.lt.s32.totalorder %v1002, 0
    %vm1043 = vcmp.lt.s32.totalorder %v1009, 0
    %vm1044 = vcmp.lt.s32.totalorder %v1016, 0
    %vm1045 = vcmp.lt.s32.totalorder %v1023, 0
    %vm1046 = vcmp.lt.s32.totalorder %v1030, 0
    %vm1047 = vmand %vm1039, %vm1031
    %vm1048 = vmand %vm1040, %vm1032
    %vm1049 = vmand %vm1041, %vm1033
    %vm1050 = vmand %vm1042, %vm1034
    %vm1051 = vmand %vm1043, %vm1035
    %vm1052 = vmand %vm1044, %vm1036
    %vm1053 = vmand %vm1045, %vm1037
    %vm1054 = vmand %vm1046, %vm1038
    %v1055 = vadd.s32 %v981, 16
    %v1056 = vadd.s32 %v988, 16
    %v1057 = vadd.s32 %v995, 16
    %v1058 = vadd.s32 %v1002, 16
    %v1059 = vadd.s32 %v1009, 16
    %v1060 = vadd.s32 %v1016, 16
    %v1061 = vadd.s32 %v1023, 16
    %v1062 = vadd.s32 %v1030, 16
    %v1063 = vsel %vm1047, %v1055, %v981
    %v1064 = vsel %vm1048, %v1056, %v988
    %v1065 = vsel %vm1049, %v1057, %v995
    %v1066 = vsel %vm1050, %v1058, %v1002
    %v1067 = vsel %vm1051, %v1059, %v1009
    %v1068 = vsel %vm1052, %v1060, %v1016
    %v1069 = vsel %vm1053, %v1061, %v1023
    %v1070 = vsel %vm1054, %v1062, %v1030
    %vm1071 = vcmp.eq.s32.totalorder %v1063, 0
    %vm1072 = vcmp.eq.s32.totalorder %v1064, 0
    %vm1073 = vcmp.eq.s32.totalorder %v1065, 0
    %vm1074 = vcmp.eq.s32.totalorder %v1066, 0
    %vm1075 = vcmp.eq.s32.totalorder %v1067, 0
    %vm1076 = vcmp.eq.s32.totalorder %v1068, 0
    %vm1077 = vcmp.eq.s32.totalorder %v1069, 0
    %vm1078 = vcmp.eq.s32.totalorder %v1070, 0
    %1087 = vrot.lane.b32.xlu0 %v434, 64
    %v1088 = vpop.permute.xlu0 %1087
    %1089 = vrot.lane.b32.xlu0 %v437, 64
    %v1090 = vpop.permute.xlu0 %1089
    %1091 = vrot.lane.b32.xlu0 %v442, 64
    %v1092 = vpop.permute.xlu0 %1091
    %1093 = vrot.lane.b32.xlu0 %v445, 64
    %v1094 = vpop.permute.xlu0 %1093
    %1095 = vrot.lane.b32.xlu0 %v450, 64
    %v1096 = vpop.permute.xlu0 %1095
    %1097 = vrot.lane.b32.xlu0 %v453, 64
    %v1098 = vpop.permute.xlu0 %1097
    %1099 = vrot.lane.b32.xlu0 %v458, 64
    %v1100 = vpop.permute.xlu0 %1099
    %1101 = vrot.lane.b32.xlu0 %v461, 64
    %v1102 = vpop.permute.xlu0 %1101
    %v1111 = vrot.slane %v1088, 7
    %v1112 = vrot.slane %v1090, 7
    %v1113 = vrot.slane %v1092, 7
    %v1114 = vrot.slane %v1094, 7
    %v1115 = vrot.slane %v1096, 7
    %v1116 = vrot.slane %v1098, 7
    %v1117 = vrot.slane %v1100, 7
    %v1118 = vrot.slane %v1102, 7
    %vm1119 = vcmp.lt.s32.totalorder %v967, 1
    %v1120 = vsel %vm1119, %v1117, %v1118
    %v1121 = vsel %vm1119, %v1116, %v1117
    %v1122 = vsel %vm1119, %v1115, %v1116
    %v1123 = vsel %vm1119, %v1114, %v1115
    %v1124 = vsel %vm1119, %v1113, %v1114
    %v1125 = vsel %vm1119, %v1112, %v1113
    %v1126 = vsel %vm1119, %v1111, %v1112
    %v1127 = vsel %vm1119, %v1118, %v1111
    %v1128 = vsel %vm1071, 1, 0
    %v1129 = vsel %vm1072, 1, 0
    %v1130 = vsel %vm1073, 1, 0
    %v1131 = vsel %vm1074, 1, 0
    %v1132 = vsel %vm1075, 1, 0
    %v1133 = vsel %vm1076, 1, 0
    %v1134 = vsel %vm1077, 1, 0
    %v1135 = vsel %vm1078, 1, 0
    %vm1136 = vcmp.eq.s32.totalorder %v1128, 1
    %vm1137 = vcmp.eq.s32.totalorder %v1129, 1
    %vm1138 = vcmp.eq.s32.totalorder %v1130, 1
    %vm1139 = vcmp.eq.s32.totalorder %v1131, 1
    %vm1140 = vcmp.eq.s32.totalorder %v1132, 1
    %vm1141 = vcmp.eq.s32.totalorder %v1133, 1
    %vm1142 = vcmp.eq.s32.totalorder %v1134, 1
    %vm1143 = vcmp.eq.s32.totalorder %v1135, 1
    %v1144 = vsel %vm1136, 0.0, %v1127
    %v1145 = vsel %vm1137, 0.0, %v1126
    %v1146 = vsel %vm1138, 0.0, %v1125
    %v1147 = vsel %vm1139, 0.0, %v1124
    %v1148 = vsel %vm1140, 0.0, %v1123
    %v1149 = vsel %vm1141, 0.0, %v1122
    %v1150 = vsel %vm1142, 0.0, %v1121
    %v1151 = vsel %vm1143, 0.0, %v1120
    %vm1152 = vcmp.eq.s32.totalorder %v1063, 15
    %vm1153 = vcmp.eq.s32.totalorder %v1064, 15
    %vm1154 = vcmp.eq.s32.totalorder %v1065, 15
    %vm1155 = vcmp.eq.s32.totalorder %v1066, 15
    %vm1156 = vcmp.eq.s32.totalorder %v1067, 15
    %vm1157 = vcmp.eq.s32.totalorder %v1068, 15
    %vm1158 = vcmp.eq.s32.totalorder %v1069, 15
    %vm1159 = vcmp.eq.s32.totalorder %v1070, 15
    %v1160 = vrot.slane %v1088, 1
    %v1161 = vrot.slane %v1090, 1
    %v1162 = vrot.slane %v1092, 1
    %v1163 = vrot.slane %v1094, 1
    %v1164 = vrot.slane %v1096, 1
    %v1165 = vrot.slane %v1098, 1
    %v1166 = vrot.slane %v1100, 1
    %v1167 = vrot.slane %v1102, 1
    %vm1168 = vcmp.lt.s32.totalorder %v967, 7
    %v1169 = vsel %vm1168, %v1166, %v1167
    %v1170 = vsel %vm1168, %v1165, %v1166
    %v1171 = vsel %vm1168, %v1164, %v1165
    %v1172 = vsel %vm1168, %v1163, %v1164
    %v1173 = vsel %vm1168, %v1162, %v1163
    %v1174 = vsel %vm1168, %v1161, %v1162
    %v1175 = vsel %vm1168, %v1160, %v1161
    %v1176 = vsel %vm1168, %v1167, %v1160
    %v1177 = vsel %vm1152, 1, 0
    %v1178 = vsel %vm1153, 1, 0
    %v1179 = vsel %vm1154, 1, 0
    %v1180 = vsel %vm1155, 1, 0
    %v1181 = vsel %vm1156, 1, 0
    %v1182 = vsel %vm1157, 1, 0
    %v1183 = vsel %vm1158, 1, 0
    %v1184 = vsel %vm1159, 1, 0
    %vm1185 = vcmp.eq.s32.totalorder %v1177, 1
    %vm1186 = vcmp.eq.s32.totalorder %v1178, 1
    %vm1187 = vcmp.eq.s32.totalorder %v1179, 1
    %vm1188 = vcmp.eq.s32.totalorder %v1180, 1
    %vm1189 = vcmp.eq.s32.totalorder %v1181, 1
    %vm1190 = vcmp.eq.s32.totalorder %v1182, 1
    %vm1191 = vcmp.eq.s32.totalorder %v1183, 1
    %vm1192 = vcmp.eq.s32.totalorder %v1184, 1
    %v1193 = vsel %vm1185, 0.0, %v1175
    %v1194 = vsel %vm1186, 0.0, %v1174
    %v1195 = vsel %vm1187, 0.0, %v1173
    %v1196 = vsel %vm1188, 0.0, %v1172
    %v1197 = vsel %vm1189, 0.0, %v1171
    %v1198 = vsel %vm1190, 0.0, %v1170
    %v1199 = vsel %vm1191, 0.0, %v1169
    %v1200 = vsel %vm1192, 0.0, %v1176
    %v1201 = vld [vmem:[%s5] sm:$0x1]
    %v1202 = vlaneseq
    %v1203 = vshrl.u32 %v1202, 7
    %v1204 = vsub.s32 0, %v1203
    %v1205 = vrot.slane %v1201, %v1204
    %v1206 = vmul.f32 %v1144, %v1205
    %v1207 = vmul.f32 %v1145, %v1205
    %v1208 = vmul.f32 %v1146, %v1205
    %v1209 = vmul.f32 %v1147, %v1205
    %v1210 = vmul.f32 %v1148, %v1205
    %v1211 = vmul.f32 %v1149, %v1205
    %v1212 = vmul.f32 %v1150, %v1205
    %v1213 = vmul.f32 %v1151, %v1205
    %v1214 = vld [vmem:[%s5 + $0x1] sm:$0x1]
    %v1215 = vlaneseq
    %v1216 = vshrl.u32 %v1215, 7
    %v1217 = vsub.s32 0, %v1216
    %v1218 = vrot.slane %v1214, %v1217
    %1220 = vrot.lane.b32.xlu0 %v1218, 64
    %v1221 = vpop.permute.xlu0 %1220
    %v1223 = vmul.f32 %v434, %v1221
    %v1224 = vmul.f32 %v437, %v1221
    %v1225 = vmul.f32 %v442, %v1221
    %v1226 = vmul.f32 %v445, %v1221
    %v1227 = vmul.f32 %v450, %v1221
    %v1228 = vmul.f32 %v453, %v1221
    %v1229 = vmul.f32 %v458, %v1221
    %v1230 = vmul.f32 %v461, %v1221
    %1239 = vrot.lane.b32.xlu0 %v1223, 64
    %v1240 = vpop.permute.xlu0 %1239
    %1241 = vrot.lane.b32.xlu0 %v1224, 64
    %v1242 = vpop.permute.xlu0 %1241
    %1243 = vrot.lane.b32.xlu0 %v1225, 64
    %v1244 = vpop.permute.xlu0 %1243
    %1245 = vrot.lane.b32.xlu0 %v1226, 64
    %v1246 = vpop.permute.xlu0 %1245
    %1247 = vrot.lane.b32.xlu0 %v1227, 64
    %v1248 = vpop.permute.xlu0 %1247
    %1249 = vrot.lane.b32.xlu0 %v1228, 64
    %v1250 = vpop.permute.xlu0 %1249
    %1251 = vrot.lane.b32.xlu0 %v1229, 64
    %v1252 = vpop.permute.xlu0 %1251
    %1253 = vrot.lane.b32.xlu0 %v1230, 64
    %v1254 = vpop.permute.xlu0 %1253
    %v1263 = vadd.f32 %v1206, %v1240
    %v1264 = vadd.f32 %v1207, %v1242
    %v1265 = vadd.f32 %v1208, %v1244
    %v1266 = vadd.f32 %v1209, %v1246
    %v1267 = vadd.f32 %v1210, %v1248
    %v1268 = vadd.f32 %v1211, %v1250
    %v1269 = vadd.f32 %v1212, %v1252
    %v1270 = vadd.f32 %v1213, %v1254
    %v1271 = vld [vmem:[%s5 + $0x2] sm:$0x1]
    %v1272 = vlaneseq
    %v1273 = vshrl.u32 %v1272, 7
    %v1274 = vsub.s32 0, %v1273
    %v1275 = vrot.slane %v1271, %v1274
    %v1276 = vmul.f32 %v1193, %v1275
    %v1277 = vmul.f32 %v1194, %v1275
    %v1278 = vmul.f32 %v1195, %v1275
    %v1279 = vmul.f32 %v1196, %v1275
    %v1280 = vmul.f32 %v1197, %v1275
    %v1281 = vmul.f32 %v1198, %v1275
    %v1282 = vmul.f32 %v1199, %v1275
    %v1283 = vmul.f32 %v1200, %v1275
    %v1284 = vadd.f32 %v1263, %v1276
    %v1285 = vadd.f32 %v1264, %v1277
    %v1286 = vadd.f32 %v1265, %v1278
    %v1287 = vadd.f32 %v1266, %v1279
    %v1288 = vadd.f32 %v1267, %v1280
    %v1289 = vadd.f32 %v1268, %v1281
    %v1290 = vadd.f32 %v1269, %v1282
    %v1291 = vadd.f32 %v1270, %v1283
    %v1292 = vld [vmem:[%s6] sm:$0x1]
    %v1294 = vlaneseq
    %v1295 = vshrl.u32 %v1294, 7
    %v1296 = vsub.s32 0, %v1295
    %v1297 = vrot.slane %v1292, %v1296
    %v1299 = vadd.f32 %v1284, %v1297
    %v1300 = vadd.f32 %v1285, %v1297
    %v1301 = vadd.f32 %v1286, %v1297
    %v1302 = vadd.f32 %v1287, %v1297
    %v1303 = vadd.f32 %v1288, %v1297
    %v1304 = vadd.f32 %v1289, %v1297
    %v1305 = vadd.f32 %v1290, %v1297
    %v1306 = vadd.f32 %v1291, %v1297
    %v1307 = vadd.f32 %v958, %v1299
    %v1308 = vadd.f32 %v959, %v1300
    %v1309 = vadd.f32 %v960, %v1301
    %v1310 = vadd.f32 %v961, %v1302
    %v1311 = vadd.f32 %v962, %v1303
    %v1312 = vadd.f32 %v963, %v1304
    %v1313 = vadd.f32 %v964, %v1305
    %v1314 = vadd.f32 %v965, %v1306
    %v1315 = vpack.c.bf16 %v1308, %v1307
    %v1316 = vpack.c.bf16 %v1310, %v1309
    %v1317 = vpack.c.bf16 %v1312, %v1311
    %v1318 = vpack.c.bf16 %v1314, %v1313
    %v1319 = vld [vmem:[#allocation6] sm:$0xf]
    %v1320 = vld [vmem:[#allocation6 + $0x4] sm:$0xf]
    %v1321 = vld [vmem:[#allocation6 + $0x8] sm:$0xf]
    %v1322 = vld [vmem:[#allocation6 + $0xc] sm:$0xf]
    %v1323 = vld [vmem:[#allocation6 + $0x10] sm:$0xf]
    %v1324 = vld [vmem:[#allocation6 + $0x14] sm:$0xf]
    %v1325 = vld [vmem:[#allocation6 + $0x18] sm:$0xf]
    %v1326 = vld [vmem:[#allocation6 + $0x1c] sm:$0xf]
    %v1327 = vld [vmem:[%s8] sm:$0x1]
    %v1329 = vlaneseq
    %v1330 = vshrl.u32 %v1329, 7
    %v1331 = vsub.s32 0, %v1330
    %v1332 = vrot.slane %v1327, %v1331
    %v1342 = vunpack.c.l.b16 %v1319
    %v1343 = vunpack.c.l.b16 %v1320
    %v1344 = vunpack.c.l.b16 %v1321
    %v1345 = vunpack.c.l.b16 %v1322
    %v1346 = vunpack.c.l.b16 %v1323
    %v1347 = vunpack.c.l.b16 %v1324
    %v1348 = vunpack.c.l.b16 %v1325
    %v1349 = vunpack.c.l.b16 %v1326
    %v1350 = vpack.c.b16 %v1343, %v1342
    %v1351 = vpack.c.b16 %v1345, %v1344
    %v1352 = vpack.c.b16 %v1347, %v1346
    %v1353 = vpack.c.b16 %v1349, %v1348
    %v1359 = vsel %vm386, %v1315, 0
    %v1362 = vsel %vm386, %v1316, 0
    %v1365 = vsel %vm386, %v1317, 0
    %v1368 = vsel %vm386, %v1318, 0
    %1370 = vmatprep.subr.bf16.mxu0 0
    %1371 = vmatpush1.bf16.msra.mxu0 0
    %1372 = vmatprep.subr.bf16.mxu0 0
    %1373 = vmatpush1.bf16.msra.mxu0 0
    %1374 = vmatprep.subr.bf16.mxu0 0
    %1375 = vmatpush1.bf16.msra.mxu0 0
    %1376 = vmatprep.subr.bf16.mxu0 0
    %1377 = vmatpush1.bf16.msra.mxu0 0
    %1378 = vmatprep.subr.bf16.mxu0 0
    %1379 = vmatpush1.bf16.msra.mxu0 %v1353
    %1380 = vmatprep.subr.bf16.mxu0 0
    %1381 = vmatpush1.bf16.msra.mxu0 %v1352
    %1382 = vmatprep.subr.bf16.mxu0 0
    %1383 = vmatpush1.bf16.msra.mxu0 %v1351
    %1384 = vmatprep.subr.bf16.mxu0 0
    %1385 = vmatpush1.bf16.msra.mxu0 %v1350
    %1386 = vmatprep.subr.bf16.mxu0 0
    %1387 = vmatpush2.bf16.msra.mxu0 0
    %1388 = vmatprep.subr.bf16.mxu0 0
    %1389 = vmatpush2.bf16.msra.mxu0 0
    %1390 = vmatprep.subr.bf16.mxu0 0
    %1391 = vmatpush2.bf16.msra.mxu0 0
    %1392 = vmatprep.subr.bf16.mxu0 0
    %1393 = vmatpush2.bf16.msra.mxu0 0
    %1394 = vmatprep.subr.bf16.mxu0 0
    %1395 = vmatpush2.bf16.msra.mxu0 0
    %1396 = vmatprep.subr.bf16.mxu0 0
    %1397 = vmatpush2.bf16.msra.mxu0 0
    %1398 = vmatprep.subr.bf16.mxu0 0
    %1399 = vmatpush2.bf16.msra.mxu0 0
    %1400 = vmatprep.subr.bf16.mxu0 0
    %1401 = vmatpush2.bf16.msra.mxu0 0
    %1402 = vmatprep.mubr.bf16.mxu0 0
    %1403 = vmatmul.mubr.bf16.gmra.mxu0 %v1359
    %v1404 = vpop.f32.mrf.mxu0
    %v1405 = vadd.f32 %v1332, %v1404
    %v1406 = vpop.f32.mrf.mxu0
    %v1407 = vpop.f32.mrf.mxu0
    %v1408 = vadd.f32 %v1332, %v1407
    %v1409 = vpop.f32.mrf.mxu0
    %1410 = vmatprep.mubr.bf16.mxu0 0
    %1411 = vmatmul.mubr.bf16.gmra.mxu0 %v1362
    %v1412 = vpop.f32.mrf.mxu0
    %v1413 = vadd.f32 %v1332, %v1412
    %v1414 = vpop.f32.mrf.mxu0
    %v1415 = vpop.f32.mrf.mxu0
    %v1416 = vadd.f32 %v1332, %v1415
    %v1417 = vpop.f32.mrf.mxu0
    %1418 = vmatprep.mubr.bf16.mxu0 0
    %1419 = vmatmul.mubr.bf16.gmra.mxu0 %v1365
    %v1420 = vpop.f32.mrf.mxu0
    %v1421 = vadd.f32 %v1332, %v1420
    %v1422 = vpop.f32.mrf.mxu0
    %v1423 = vpop.f32.mrf.mxu0
    %v1424 = vadd.f32 %v1332, %v1423
    %v1425 = vpop.f32.mrf.mxu0
    %1426 = vmatprep.mubr.bf16.mxu0 0
    %1427 = vmatmul.mubr.bf16.gmra.mxu0 %v1368
    %v1428 = vpop.f32.mrf.mxu0
    %v1429 = vadd.f32 %v1332, %v1428
    %v1430 = vpop.f32.mrf.mxu0
    %v1431 = vpop.f32.mrf.mxu0
    %v1432 = vadd.f32 %v1332, %v1431
    %v1433 = vpop.f32.mrf.mxu0
    %1434 = vdwg.mxu0
    %1443 = vrot.lane.b32.xlu0 %v1405, 64
    %v1444 = vpop.permute.xlu0 %1443
    %1445 = vrot.lane.b32.xlu0 %v1408, 64
    %v1446 = vpop.permute.xlu0 %1445
    %1447 = vrot.lane.b32.xlu0 %v1413, 64
    %v1448 = vpop.permute.xlu0 %1447
    %1449 = vrot.lane.b32.xlu0 %v1416, 64
    %v1450 = vpop.permute.xlu0 %1449
    %1451 = vrot.lane.b32.xlu0 %v1421, 64
    %v1452 = vpop.permute.xlu0 %1451
    %1453 = vrot.lane.b32.xlu0 %v1424, 64
    %v1454 = vpop.permute.xlu0 %1453
    %1455 = vrot.lane.b32.xlu0 %v1429, 64
    %v1456 = vpop.permute.xlu0 %1455
    %1457 = vrot.lane.b32.xlu0 %v1432, 64
    %v1458 = vpop.permute.xlu0 %1457
    %v1467 = vadd.f32 %v323, %v1444
    %v1468 = vadd.f32 %v324, %v1446
    %v1469 = vadd.f32 %v325, %v1448
    %v1470 = vadd.f32 %v326, %v1450
    %v1471 = vadd.f32 %v327, %v1452
    %v1472 = vadd.f32 %v328, %v1454
    %v1473 = vadd.f32 %v329, %v1456
    %v1474 = vadd.f32 %v330, %v1458
    %v1475 = vpack.c.bf16 %v1468, %v1467
    %v1476 = vpack.c.bf16 %v1470, %v1469
    %v1477 = vpack.c.bf16 %v1472, %v1471
    %v1478 = vpack.c.bf16 %v1474, %v1473
    %v1479 = vld [vmem:[#allocation8] sm:$0xf]
    %v1480 = vld [vmem:[#allocation8 + $0x4] sm:$0xf]
    %v1481 = vld [vmem:[#allocation8 + $0x8] sm:$0xf]
    %v1482 = vld [vmem:[#allocation8 + $0xc] sm:$0xf]
    %v1483 = vld [vmem:[#allocation8 + $0x10] sm:$0xf]
    %v1484 = vld [vmem:[#allocation8 + $0x14] sm:$0xf]
    %v1485 = vld [vmem:[#allocation8 + $0x18] sm:$0xf]
    %v1486 = vld [vmem:[#allocation8 + $0x1c] sm:$0xf]
    %v1487 = vld [vmem:[%s10] sm:$0x1]
    %v1489 = vlaneseq
    %v1490 = vshrl.u32 %v1489, 7
    %v1491 = vsub.s32 0, %v1490
    %v1492 = vrot.slane %v1487, %v1491
    %1498 = vrot.lane.b32.xlu0 %v1475, 64
    %v1499 = vpop.permute.xlu0 %1498
    %1500 = vrot.lane.b32.xlu0 %v1476, 64
    %v1501 = vpop.permute.xlu0 %1500
    %1502 = vrot.lane.b32.xlu0 %v1477, 64
    %v1503 = vpop.permute.xlu0 %1502
    %1504 = vrot.lane.b32.xlu0 %v1478, 64
    %v1505 = vpop.permute.xlu0 %1504
    %v1514 = vunpack.c.l.b16 %v1479
    %v1515 = vunpack.c.l.b16 %v1480
    %v1516 = vunpack.c.l.b16 %v1481
    %v1517 = vunpack.c.l.b16 %v1482
    %v1518 = vunpack.c.l.b16 %v1483
    %v1519 = vunpack.c.l.b16 %v1484
    %v1520 = vunpack.c.l.b16 %v1485
    %v1521 = vunpack.c.l.b16 %v1486
    %v1522 = vpack.c.b16 %v1515, %v1514
    %v1523 = vpack.c.b16 %v1517, %v1516
    %v1524 = vpack.c.b16 %v1519, %v1518
    %v1525 = vpack.c.b16 %v1521, %v1520
    %v1531 = vsel %vm386, %v1499, 0
    %v1534 = vsel %vm386, %v1501, 0
    %v1537 = vsel %vm386, %v1503, 0
    %v1540 = vsel %vm386, %v1505, 0
    %1542 = vmatprep.subr.bf16.mxu0 0
    %1543 = vmatpush1.bf16.msra.mxu0 0
    %1544 = vmatprep.subr.bf16.mxu0 0
    %1545 = vmatpush1.bf16.msra.mxu0 0
    %1546 = vmatprep.subr.bf16.mxu0 0
    %1547 = vmatpush1.bf16.msra.mxu0 0
    %1548 = vmatprep.subr.bf16.mxu0 0
    %1549 = vmatpush1.bf16.msra.mxu0 0
    %1550 = vmatprep.subr.bf16.mxu0 0
    %1551 = vmatpush1.bf16.msra.mxu0 %v1525
    %1552 = vmatprep.subr.bf16.mxu0 0
    %1553 = vmatpush1.bf16.msra.mxu0 %v1524
    %1554 = vmatprep.subr.bf16.mxu0 0
    %1555 = vmatpush1.bf16.msra.mxu0 %v1523
    %1556 = vmatprep.subr.bf16.mxu0 0
    %1557 = vmatpush1.bf16.msra.mxu0 %v1522
    %1558 = vmatprep.subr.bf16.mxu0 0
    %1559 = vmatpush2.bf16.msra.mxu0 0
    %1560 = vmatprep.subr.bf16.mxu0 0
    %1561 = vmatpush2.bf16.msra.mxu0 0
    %1562 = vmatprep.subr.bf16.mxu0 0
    %1563 = vmatpush2.bf16.msra.mxu0 0
    %1564 = vmatprep.subr.bf16.mxu0 0
    %1565 = vmatpush2.bf16.msra.mxu0 0
    %1566 = vmatprep.subr.bf16.mxu0 0
    %1567 = vmatpush2.bf16.msra.mxu0 0
    %1568 = vmatprep.subr.bf16.mxu0 0
    %1569 = vmatpush2.bf16.msra.mxu0 0
    %1570 = vmatprep.subr.bf16.mxu0 0
    %1571 = vmatpush2.bf16.msra.mxu0 0
    %1572 = vmatprep.subr.bf16.mxu0 0
    %1573 = vmatpush2.bf16.msra.mxu0 0
    %1574 = vmatprep.mubr.bf16.mxu0 0
    %1575 = vmatmul.mubr.bf16.gmra.mxu0 %v1531
    %v1576 = vpop.f32.mrf.mxu0
    %v1577 = vadd.f32 %v1492, %v1576
    %v1578 = vpop.f32.mrf.mxu0
    %v1579 = vpop.f32.mrf.mxu0
    %v1580 = vadd.f32 %v1492, %v1579
    %v1581 = vpop.f32.mrf.mxu0
    %1582 = vmatprep.mubr.bf16.mxu0 0
    %1583 = vmatmul.mubr.bf16.gmra.mxu0 %v1534
    %v1584 = vpop.f32.mrf.mxu0
    %v1585 = vadd.f32 %v1492, %v1584
    %v1586 = vpop.f32.mrf.mxu0
    %v1587 = vpop.f32.mrf.mxu0
    %v1588 = vadd.f32 %v1492, %v1587
    %v1589 = vpop.f32.mrf.mxu0
    %1590 = vmatprep.mubr.bf16.mxu0 0
    %1591 = vmatmul.mubr.bf16.gmra.mxu0 %v1537
    %v1592 = vpop.f32.mrf.mxu0
    %v1593 = vadd.f32 %v1492, %v1592
    %v1594 = vpop.f32.mrf.mxu0
    %v1595 = vpop.f32.mrf.mxu0
    %v1596 = vadd.f32 %v1492, %v1595
    %v1597 = vpop.f32.mrf.mxu0
    %1598 = vmatprep.mubr.bf16.mxu0 0
    %1599 = vmatmul.mubr.bf16.gmra.mxu0 %v1540
    %v1600 = vpop.f32.mrf.mxu0
    %v1601 = vadd.f32 %v1492, %v1600
    %v1602 = vpop.f32.mrf.mxu0
    %v1603 = vpop.f32.mrf.mxu0
    %v1604 = vadd.f32 %v1492, %v1603
    %v1605 = vpop.f32.mrf.mxu0
    %1606 = vdwg.mxu0
    %v1607 = vxor.u32 %v1577, 2147483648
    %v1608 = vxor.u32 %v1580, 2147483648
    %v1609 = vxor.u32 %v1585, 2147483648
    %v1610 = vxor.u32 %v1588, 2147483648
    %v1611 = vxor.u32 %v1593, 2147483648
    %v1612 = vxor.u32 %v1596, 2147483648
    %v1613 = vxor.u32 %v1601, 2147483648
    %v1614 = vxor.u32 %v1604, 2147483648
    %v1615 = vmul.f32 %v1607, 1.442695
    %v1616 = vpow.pop %v1615
    %v1617 = vmul.f32 %v1608, 1.442695
    %v1618 = vpow.pop %v1617
    %v1619 = vmul.f32 %v1609, 1.442695
    %v1620 = vpow.pop %v1619
    %v1621 = vmul.f32 %v1610, 1.442695
    %v1622 = vpow.pop %v1621
    %v1623 = vmul.f32 %v1611, 1.442695
    %v1624 = vpow.pop %v1623
    %v1625 = vmul.f32 %v1612, 1.442695
    %v1626 = vpow.pop %v1625
    %v1627 = vmul.f32 %v1613, 1.442695
    %v1628 = vpow.pop %v1627
    %v1629 = vmul.f32 %v1614, 1.442695
    %v1630 = vpow.pop %v1629
    %v1631 = vadd.f32 %v1616, 1.0
    %v1632 = vadd.f32 %v1618, 1.0
    %v1633 = vadd.f32 %v1620, 1.0
    %v1634 = vadd.f32 %v1622, 1.0
    %v1635 = vadd.f32 %v1624, 1.0
    %v1636 = vadd.f32 %v1626, 1.0
    %v1637 = vadd.f32 %v1628, 1.0
    %v1638 = vadd.f32 %v1630, 1.0
    %v1639 = vrcp.pop %v1631
    %v1640 = vmul.f32 1.0, %v1639
    %v1641 = vrcp.pop %v1632
    %v1642 = vmul.f32 1.0, %v1641
    %v1643 = vrcp.pop %v1633
    %v1644 = vmul.f32 1.0, %v1643
    %v1645 = vrcp.pop %v1634
    %v1646 = vmul.f32 1.0, %v1645
    %v1647 = vrcp.pop %v1635
    %v1648 = vmul.f32 1.0, %v1647
    %v1649 = vrcp.pop %v1636
    %v1650 = vmul.f32 1.0, %v1649
    %v1651 = vrcp.pop %v1637
    %v1652 = vmul.f32 1.0, %v1651
    %v1653 = vrcp.pop %v1638
    %v1654 = vmul.f32 1.0, %v1653
    %v1655 = vmul.f32 %v1577, %v1640
    %v1656 = vmul.f32 %v1580, %v1642
    %v1657 = vmul.f32 %v1585, %v1644
    %v1658 = vmul.f32 %v1588, %v1646
    %v1659 = vmul.f32 %v1593, %v1648
    %v1660 = vmul.f32 %v1596, %v1650
    %v1661 = vmul.f32 %v1601, %v1652
    %v1662 = vmul.f32 %v1604, %v1654
    %v1663 = vpack.c.bf16 %v1656, %v1655
    %v1664 = vpack.c.bf16 %v1658, %v1657
    %v1665 = vpack.c.bf16 %v1660, %v1659
    %v1666 = vpack.c.bf16 %v1662, %v1661
    %v1667 = vld [vmem:[%s11] sm:$0xf]
    %v1668 = vld [vmem:[%s11 + $0x4] sm:$0xf]
    %v1669 = vld [vmem:[%s11 + $0x8] sm:$0xf]
    %v1670 = vld [vmem:[%s11 + $0xc] sm:$0xf]
    %v1671 = vld [vmem:[%s11 + $0x10] sm:$0xf]
    %v1672 = vld [vmem:[%s11 + $0x14] sm:$0xf]
    %v1673 = vld [vmem:[%s11 + $0x18] sm:$0xf]
    %v1674 = vld [vmem:[%s11 + $0x1c] sm:$0xf]
    %v1675 = vld [vmem:[%s11 + $0x20] sm:$0xf]
    %v1676 = vld [vmem:[%s11 + $0x24] sm:$0xf]
    %v1677 = vld [vmem:[%s11 + $0x28] sm:$0xf]
    %v1678 = vld [vmem:[%s11 + $0x2c] sm:$0xf]
    %v1679 = vld [vmem:[%s11 + $0x30] sm:$0xf]
    %v1680 = vld [vmem:[%s11 + $0x34] sm:$0xf]
    %v1681 = vld [vmem:[%s11 + $0x38] sm:$0xf]
    %v1682 = vld [vmem:[%s11 + $0x3c] sm:$0xf]
    %v1683 = vld [vmem:[%s12] sm:$0x1]
    %v1685 = vlaneseq
    %v1686 = vshrl.u32 %v1685, 7
    %v1687 = vsub.s32 0, %v1686
    %v1688 = vrot.slane %v1683, %v1687
    %v1706 = vunpack.c.l.b16 %v1667
    %v1707 = vunpack.c.l.b16 %v1668
    %v1708 = vunpack.c.l.b16 %v1669
    %v1709 = vunpack.c.l.b16 %v1670
    %v1710 = vunpack.c.l.b16 %v1671
    %v1711 = vunpack.c.l.b16 %v1672
    %v1712 = vunpack.c.l.b16 %v1673
    %v1713 = vunpack.c.l.b16 %v1674
    %v1714 = vunpack.c.l.b16 %v1675
    %v1715 = vunpack.c.l.b16 %v1676
    %v1716 = vunpack.c.l.b16 %v1677
    %v1717 = vunpack.c.l.b16 %v1678
    %v1718 = vunpack.c.l.b16 %v1679
    %v1719 = vunpack.c.l.b16 %v1680
    %v1720 = vunpack.c.l.b16 %v1681
    %v1721 = vunpack.c.l.b16 %v1682
    %v1722 = vpack.c.b16 %v1707, %v1706
    %v1723 = vpack.c.b16 %v1709, %v1708
    %v1724 = vpack.c.b16 %v1711, %v1710
    %v1725 = vpack.c.b16 %v1713, %v1712
    %v1726 = vpack.c.b16 %v1715, %v1714
    %v1727 = vpack.c.b16 %v1717, %v1716
    %v1728 = vpack.c.b16 %v1719, %v1718
    %v1729 = vpack.c.b16 %v1721, %v1720
    %1738 = vmatprep.subr.bf16.mxu0 0
    %1739 = vmatpush1.bf16.msra.mxu0 %v1729
    %1740 = vmatprep.subr.bf16.mxu0 0
    %1741 = vmatpush1.bf16.msra.mxu0 %v1728
    %1742 = vmatprep.subr.bf16.mxu0 0
    %1743 = vmatpush1.bf16.msra.mxu0 %v1727
    %1744 = vmatprep.subr.bf16.mxu0 0
    %1745 = vmatpush1.bf16.msra.mxu0 %v1726
    %1746 = vmatprep.subr.bf16.mxu0 0
    %1747 = vmatpush1.bf16.msra.mxu0 %v1725
    %1748 = vmatprep.subr.bf16.mxu0 0
    %1749 = vmatpush1.bf16.msra.mxu0 %v1724
    %1750 = vmatprep.subr.bf16.mxu0 0
    %1751 = vmatpush1.bf16.msra.mxu0 %v1723
    %1752 = vmatprep.subr.bf16.mxu0 0
    %1753 = vmatpush1.bf16.msra.mxu0 %v1722
    %1754 = vmatprep.subr.bf16.mxu0 0
    %1755 = vmatpush2.bf16.msra.mxu0 0
    %1756 = vmatprep.subr.bf16.mxu0 0
    %1757 = vmatpush2.bf16.msra.mxu0 0
    %1758 = vmatprep.subr.bf16.mxu0 0
    %1759 = vmatpush2.bf16.msra.mxu0 0
    %1760 = vmatprep.subr.bf16.mxu0 0
    %1761 = vmatpush2.bf16.msra.mxu0 0
    %1762 = vmatprep.subr.bf16.mxu0 0
    %1763 = vmatpush2.bf16.msra.mxu0 0
    %1764 = vmatprep.subr.bf16.mxu0 0
    %1765 = vmatpush2.bf16.msra.mxu0 0
    %1766 = vmatprep.subr.bf16.mxu0 0
    %1767 = vmatpush2.bf16.msra.mxu0 0
    %1768 = vmatprep.subr.bf16.mxu0 0
    %1769 = vmatpush2.bf16.msra.mxu0 0
    %1770 = vmatprep.mubr.bf16.mxu0 0
    %1771 = vmatmul.mubr.bf16.gmra.mxu0 %v1663
    %v1772 = vpop.f32.mrf.mxu0
    %v1773 = vadd.f32 %v1688, %v1772
    %v1774 = vpop.f32.mrf.mxu0
    %v1775 = vpop.f32.mrf.mxu0
    %v1776 = vadd.f32 %v1688, %v1775
    %v1777 = vpop.f32.mrf.mxu0
    %1778 = vmatprep.mubr.bf16.mxu0 0
    %1779 = vmatmul.mubr.bf16.gmra.mxu0 %v1664
    %v1780 = vpop.f32.mrf.mxu0
    %v1781 = vadd.f32 %v1688, %v1780
    %v1782 = vpop.f32.mrf.mxu0
    %v1783 = vpop.f32.mrf.mxu0
    %v1784 = vadd.f32 %v1688, %v1783
    %v1785 = vpop.f32.mrf.mxu0
    %1786 = vmatprep.mubr.bf16.mxu0 0
    %1787 = vmatmul.mubr.bf16.gmra.mxu0 %v1665
    %v1788 = vpop.f32.mrf.mxu0
    %v1789 = vadd.f32 %v1688, %v1788
    %v1790 = vpop.f32.mrf.mxu0
    %v1791 = vpop.f32.mrf.mxu0
    %v1792 = vadd.f32 %v1688, %v1791
    %v1793 = vpop.f32.mrf.mxu0
    %1794 = vmatprep.mubr.bf16.mxu0 0
    %1795 = vmatmul.mubr.bf16.gmra.mxu0 %v1666
    %v1796 = vpop.f32.mrf.mxu0
    %v1797 = vadd.f32 %v1688, %v1796
    %v1798 = vpop.f32.mrf.mxu0
    %v1799 = vpop.f32.mrf.mxu0
    %v1800 = vadd.f32 %v1688, %v1799
    %v1801 = vpop.f32.mrf.mxu0
    %1802 = vdwg.mxu0
    %1811 = vrot.lane.b32.xlu0 %v1773, 64
    %v1812 = vpop.permute.xlu0 %1811
    %1813 = vrot.lane.b32.xlu0 %v1776, 64
    %v1814 = vpop.permute.xlu0 %1813
    %1815 = vrot.lane.b32.xlu0 %v1781, 64
    %v1816 = vpop.permute.xlu0 %1815
    %1817 = vrot.lane.b32.xlu0 %v1784, 64
    %v1818 = vpop.permute.xlu0 %1817
    %1819 = vrot.lane.b32.xlu0 %v1789, 64
    %v1820 = vpop.permute.xlu0 %1819
    %1821 = vrot.lane.b32.xlu0 %v1792, 64
    %v1822 = vpop.permute.xlu0 %1821
    %1823 = vrot.lane.b32.xlu0 %v1797, 64
    %v1824 = vpop.permute.xlu0 %1823
    %1825 = vrot.lane.b32.xlu0 %v1800, 64
    %v1826 = vpop.permute.xlu0 %1825
    %v1835 = vadd.f32 %v1467, %v1812
    %v1836 = vadd.f32 %v1468, %v1814
    %v1837 = vadd.f32 %v1469, %v1816
    %v1838 = vadd.f32 %v1470, %v1818
    %v1839 = vadd.f32 %v1471, %v1820
    %v1840 = vadd.f32 %v1472, %v1822
    %v1841 = vadd.f32 %v1473, %v1824
    %v1842 = vadd.f32 %v1474, %v1826
    %v1843 = vsel %vm386, %v323, %v1835
    %v1844 = vsel %vm386, %v324, %v1836
    %v1845 = vsel %vm386, %v325, %v1837
    %v1846 = vsel %vm386, %v326, %v1838
    %v1847 = vsel %vm386, %v327, %v1839
    %v1848 = vsel %vm386, %v328, %v1840
    %v1849 = vsel %vm386, %v329, %v1841
    %v1850 = vsel %vm386, %v330, %v1842
    %v1851 = vpack.c.bf16 %v1844, %v1843
    %v1852 = vpack.c.bf16 %v1846, %v1845
    %v1853 = vpack.c.bf16 %v1848, %v1847
    %v1854 = vpack.c.bf16 %v1850, %v1849
    %v1855 = vld [vmem:[#allocation9] sm:$0xf]
    %v1856 = vld [vmem:[#allocation9 + $0x4] sm:$0xf]
    %v1857 = vld [vmem:[#allocation9 + $0x8] sm:$0xf]
    %v1858 = vld [vmem:[#allocation9 + $0xc] sm:$0xf]
    %v1859 = vld [vmem:[#allocation9 + $0x10] sm:$0xf]
    %v1860 = vld [vmem:[#allocation9 + $0x14] sm:$0xf]
    %v1861 = vld [vmem:[#allocation9 + $0x18] sm:$0xf]
    %v1862 = vld [vmem:[#allocation9 + $0x1c] sm:$0xf]
    %v1863 = vld [vmem:[#allocation9 + $0x20] sm:$0xf]
    %v1864 = vld [vmem:[#allocation9 + $0x24] sm:$0xf]
    %v1865 = vld [vmem:[#allocation9 + $0x28] sm:$0xf]
    %v1866 = vld [vmem:[#allocation9 + $0x2c] sm:$0xf]
    %v1867 = vld [vmem:[#allocation9 + $0x30] sm:$0xf]
    %v1868 = vld [vmem:[#allocation9 + $0x34] sm:$0xf]
    %v1869 = vld [vmem:[#allocation9 + $0x38] sm:$0xf]
    %v1870 = vld [vmem:[#allocation9 + $0x3c] sm:$0xf]
    %v1871 = vld [vmem:[%s14] sm:$0x1]
    %v1873 = vlaneseq
    %v1874 = vshrl.u32 %v1873, 7
    %v1875 = vsub.s32 0, %v1874
    %v1876 = vrot.slane %v1871, %v1875
    %v1894 = vunpack.c.l.b16 %v1855
    %v1895 = vunpack.c.l.b16 %v1856
    %v1896 = vunpack.c.l.b16 %v1857
    %v1897 = vunpack.c.l.b16 %v1858
    %v1898 = vunpack.c.l.b16 %v1859
    %v1899 = vunpack.c.l.b16 %v1860
    %v1900 = vunpack.c.l.b16 %v1861
    %v1901 = vunpack.c.l.b16 %v1862
    %v1902 = vunpack.c.l.b16 %v1863
    %v1903 = vunpack.c.l.b16 %v1864
    %v1904 = vunpack.c.l.b16 %v1865
    %v1905 = vunpack.c.l.b16 %v1866
    %v1906 = vunpack.c.l.b16 %v1867
    %v1907 = vunpack.c.l.b16 %v1868
    %v1908 = vunpack.c.l.b16 %v1869
    %v1909 = vunpack.c.l.b16 %v1870
    %v1910 = vpack.c.b16 %v1895, %v1894
    %v1911 = vpack.c.b16 %v1897, %v1896
    %v1912 = vpack.c.b16 %v1899, %v1898
    %v1913 = vpack.c.b16 %v1901, %v1900
    %v1914 = vpack.c.b16 %v1903, %v1902
    %v1915 = vpack.c.b16 %v1905, %v1904
    %v1916 = vpack.c.b16 %v1907, %v1906
    %v1917 = vpack.c.b16 %v1909, %v1908
    %1926 = vmatprep.subr.bf16.mxu0 0
    %1927 = vmatpush1.bf16.msra.mxu0 %v1917
    %1928 = vmatprep.subr.bf16.mxu0 0
    %1929 = vmatpush1.bf16.msra.mxu0 %v1916
    %1930 = vmatprep.subr.bf16.mxu0 0
    %1931 = vmatpush1.bf16.msra.mxu0 %v1915
    %1932 = vmatprep.subr.bf16.mxu0 0
    %1933 = vmatpush1.bf16.msra.mxu0 %v1914
    %1934 = vmatprep.subr.bf16.mxu0 0
    %1935 = vmatpush1.bf16.msra.mxu0 %v1913
    %1936 = vmatprep.subr.bf16.mxu0 0
    %1937 = vmatpush1.bf16.msra.mxu0 %v1912
    %1938 = vmatprep.subr.bf16.mxu0 0
    %1939 = vmatpush1.bf16.msra.mxu0 %v1911
    %1940 = vmatprep.subr.bf16.mxu0 0
    %1941 = vmatpush1.bf16.msra.mxu0 %v1910
    %1942 = vmatprep.subr.bf16.mxu0 0
    %1943 = vmatpush2.bf16.msra.mxu0 0
    %1944 = vmatprep.subr.bf16.mxu0 0
    %1945 = vmatpush2.bf16.msra.mxu0 0
    %1946 = vmatprep.subr.bf16.mxu0 0
    %1947 = vmatpush2.bf16.msra.mxu0 0
    %1948 = vmatprep.subr.bf16.mxu0 0
    %1949 = vmatpush2.bf16.msra.mxu0 0
    %1950 = vmatprep.subr.bf16.mxu0 0
    %1951 = vmatpush2.bf16.msra.mxu0 0
    %1952 = vmatprep.subr.bf16.mxu0 0
    %1953 = vmatpush2.bf16.msra.mxu0 0
    %1954 = vmatprep.subr.bf16.mxu0 0
    %1955 = vmatpush2.bf16.msra.mxu0 0
    %1956 = vmatprep.subr.bf16.mxu0 0
    %1957 = vmatpush2.bf16.msra.mxu0 0
    %1958 = vmatprep.mubr.bf16.mxu0 0
    %1959 = vmatmul.mubr.bf16.gmra.mxu0 %v1851
    %v1960 = vpop.f32.mrf.mxu0
    %v1961 = vadd.f32 %v1876, %v1960
    %v1962 = vpop.f32.mrf.mxu0
    %v1963 = vpop.f32.mrf.mxu0
    %v1964 = vadd.f32 %v1876, %v1963
    %v1965 = vpop.f32.mrf.mxu0
    %1966 = vmatprep.mubr.bf16.mxu0 0
    %1967 = vmatmul.mubr.bf16.gmra.mxu0 %v1852
    %v1968 = vpop.f32.mrf.mxu0
    %v1969 = vadd.f32 %v1876, %v1968
    %v1970 = vpop.f32.mrf.mxu0
    %v1971 = vpop.f32.mrf.mxu0
    %v1972 = vadd.f32 %v1876, %v1971
    %v1973 = vpop.f32.mrf.mxu0
    %1974 = vmatprep.mubr.bf16.mxu0 0
    %1975 = vmatmul.mubr.bf16.gmra.mxu0 %v1853
    %v1976 = vpop.f32.mrf.mxu0
    %v1977 = vadd.f32 %v1876, %v1976
    %v1978 = vpop.f32.mrf.mxu0
    %v1979 = vpop.f32.mrf.mxu0
    %v1980 = vadd.f32 %v1876, %v1979
    %v1981 = vpop.f32.mrf.mxu0
    %1982 = vmatprep.mubr.bf16.mxu0 0
    %1983 = vmatmul.mubr.bf16.gmra.mxu0 %v1854
    %v1984 = vpop.f32.mrf.mxu0
    %v1985 = vadd.f32 %v1876, %v1984
    %v1986 = vpop.f32.mrf.mxu0
    %v1987 = vpop.f32.mrf.mxu0
    %v1988 = vadd.f32 %v1876, %v1987
    %v1989 = vpop.f32.mrf.mxu0
    %1990 = vdwg.mxu0
    %v1991 = vxor.u32 %v1961, 2147483648
    %v1992 = vxor.u32 %v1964, 2147483648
    %v1993 = vxor.u32 %v1969, 2147483648
    %v1994 = vxor.u32 %v1972, 2147483648
    %v1995 = vxor.u32 %v1977, 2147483648
    %v1996 = vxor.u32 %v1980, 2147483648
    %v1997 = vxor.u32 %v1985, 2147483648
    %v1998 = vxor.u32 %v1988, 2147483648
    %v1999 = vmul.f32 %v1991, 1.442695
    %v2000 = vpow.pop %v1999
    %v2001 = vmul.f32 %v1992, 1.442695
    %v2002 = vpow.pop %v2001
    %v2003 = vmul.f32 %v1993, 1.442695
    %v2004 = vpow.pop %v2003
    %v2005 = vmul.f32 %v1994, 1.442695
    %v2006 = vpow.pop %v2005
    %v2007 = vmul.f32 %v1995, 1.442695
    %v2008 = vpow.pop %v2007
    %v2009 = vmul.f32 %v1996, 1.442695
    %v2010 = vpow.pop %v2009
    %v2011 = vmul.f32 %v1997, 1.442695
    %v2012 = vpow.pop %v2011
    %v2013 = vmul.f32 %v1998, 1.442695
    %v2014 = vpow.pop %v2013
    %v2015 = vadd.f32 %v2000, 1.0
    %v2016 = vadd.f32 %v2002, 1.0
    %v2017 = vadd.f32 %v2004, 1.0
    %v2018 = vadd.f32 %v2006, 1.0
    %v2019 = vadd.f32 %v2008, 1.0
    %v2020 = vadd.f32 %v2010, 1.0
    %v2021 = vadd.f32 %v2012, 1.0
    %v2022 = vadd.f32 %v2014, 1.0
    %v2023 = vrcp.pop %v2015
    %v2024 = vmul.f32 1.0, %v2023
    %v2025 = vrcp.pop %v2016
    %v2026 = vmul.f32 1.0, %v2025
    %v2027 = vrcp.pop %v2017
    %v2028 = vmul.f32 1.0, %v2027
    %v2029 = vrcp.pop %v2018
    %v2030 = vmul.f32 1.0, %v2029
    %v2031 = vrcp.pop %v2019
    %v2032 = vmul.f32 1.0, %v2031
    %v2033 = vrcp.pop %v2020
    %v2034 = vmul.f32 1.0, %v2033
    %v2035 = vrcp.pop %v2021
    %v2036 = vmul.f32 1.0, %v2035
    %v2037 = vrcp.pop %v2022
    %v2038 = vmul.f32 1.0, %v2037
    %v2039 = vmul.f32 %v1961, %v2024
    %v2040 = vmul.f32 %v1964, %v2026
    %v2041 = vmul.f32 %v1969, %v2028
    %v2042 = vmul.f32 %v1972, %v2030
    %v2043 = vmul.f32 %v1977, %v2032
    %v2044 = vmul.f32 %v1980, %v2034
    %v2045 = vmul.f32 %v1985, %v2036
    %v2046 = vmul.f32 %v1988, %v2038
    %2047 = vst [vmem:[#allocation11] sm:$0xff] %v2039
    %2048 = vst [vmem:[#allocation11 + $0x8] sm:$0xff] %v2040
    %2049 = vst [vmem:[#allocation11 + $0x10] sm:$0xff] %v2041
    %2050 = vst [vmem:[#allocation11 + $0x18] sm:$0xff] %v2042
    %2051 = vst [vmem:[#allocation11 + $0x20] sm:$0xff] %v2043
    %2052 = vst [vmem:[#allocation11 + $0x28] sm:$0xff] %v2044
    %2053 = vst [vmem:[#allocation11 + $0x30] sm:$0xff] %v2045
    %2054 = vst [vmem:[#allocation11 + $0x38] sm:$0xff] %v2046
    // Predicated region
    $region78: #{tpu_custom_call.1} parent=1 // pred_check
      _
    $region79: #{tpu_custom_call.1} parent=1 // pred_check_branch
      %2056 = sbr.rel (0) target = $region81
    $region80: #{tpu_custom_call.1} parent=1 // pred_region
      %s2058 = ssub.s32 1024, 1024
      %2059 = vsyncadd [#allocation5], %s2058
      %s2060 = sshll.u32 [#allocation11], 4
      %s2061 = int_to_ptr.vmem [resolvable:$true] %s2060
      %2066 = dma.vmem_to_hbm [thread:$0]  %s2061, 1024, %s15, [#allocation5], 128, 128, 8
    $region81: #{tpu_custom_call.1} parent=1 // pred_fallthru
      _
    // Predicated region
    $region82: #{tpu_custom_call.1} parent=1 // pred_check
      _
    $region83: #{tpu_custom_call.1} parent=1 // pred_check_branch
      %2068 = sbr.rel (0) target = $region85
    $region84: #{tpu_custom_call.1} parent=1 // pred_region
      %2069 = dma.done [#allocation5], 1024
    $region85: #{tpu_custom_call.1} parent=1 // pred_fallthru
      _
    %2070 = vsyncpa [#allocation4], 1
    %2071 = vsyncpa [#allocation7], 1
    %2072 = vsyncpa [#allocation10], 1
    %2073 = vsyncpa [#allocation5], 1

</llo_original>
